<compile_context>
chip_gen: v7x
topology: tpu7x:2x2x1
jax: 0.10.0
libtpu: 0.0.40
codegen_flags: <defaults>
</compile_context>

<pallas_src>
import functools

import jax
import jax.numpy as jnp
from jax.experimental import pallas as pl
from jax.experimental.pallas import tpu as pltpu

EMBED_DIM = 64
X_DIM = 784
IN_FEATURES = X_DIM + EMBED_DIM  # 848
HIDDEN = 128
NUM_CLASSES = 10
EMB_ROWS = 16  # NUM_CLASSES padded to a sublane-friendly multiple of 8


def _leaky_relu(x, slope=0.3):
    return jnp.where(x > 0, x, slope * x)


def _round_up(n, m):
    return ((n + m - 1) // m) * m


def _default_block_b(batch):
    if batch <= 128:
        return max(8, _round_up(batch, 8))  # single tile
    # >= 2 grid steps (so the "parallel" axis shards across v7x's two TensorCores),
    # 128-row multiples (lane-dense output blocks), capped at 512 rows to amortize
    # the ~0.35 us per-step overhead while keeping VMEM ~4 MiB.
    return min(512, _round_up(-(-batch // 2), 128))


def critic_mlp_kernel(x_ref, c_ref, emb_ref, w1_ref, w2_ref, b2_ref,
                      w3_ref, b3_ref, w4_ref, b4_ref, o_ref, *, compute_dtype):
    """Fused 4-layer MLP over one batch tile.

    x_ref   : (TB, 784)  image tile (f32 or bf16; cast to bf16 for the MXU)
    c_ref   : (TB, 1)    int32 class labels
    emb_ref : (16, 128)  f32 table = embedding @ W1_emb + b1 (rows 10..15 are zero pad)
    w1_ref  : (784, 128) bf16   w2/w3_ref: (128, 128) bf16   b2/b3: (1, 128) f32
    w4_ref  : (1, 128)   f32    b4_ref: (1, 1) f32
    o_ref   : (1, TB)    f32 critic scores, lane-dense
    """
    x = x_ref[...].astype(compute_dtype)

    # In-kernel embedding gather: one-hot(label) @ emb_table (exact row select, f32).
    labels = c_ref[...]                                             # (TB, 1) int32
    tb = labels.shape[0]
    iota = jax.lax.broadcasted_iota(jnp.int32, (tb, EMB_ROWS), 1)   # (TB, 16)
    onehot = (iota == labels).astype(jnp.float32)                   # (TB, 16)
    h1b = jnp.dot(onehot, emb_ref[...],
                  preferred_element_type=jnp.float32)               # (TB, 128) f32

    # Layer 1: x @ W1_img  (+ embedding contribution and b1 via h1b).
    h = jnp.dot(x, w1_ref[...], preferred_element_type=jnp.float32) + h1b
    h = _leaky_relu(h)
    # nn.Dropout(0.5): identity in eval mode.

    # Layer 2.
    h = jnp.dot(h.astype(compute_dtype), w2_ref[...],
                preferred_element_type=jnp.float32) + b2_ref[...]
    h = _leaky_relu(h)

    # Layer 3.
    h = jnp.dot(h.astype(compute_dtype), w3_ref[...],
                preferred_element_type=jnp.float32) + b3_ref[...]
    h = _leaky_relu(h)

    # Layer 4 (128 -> 1): VPU multiply + lane reduction, then a cheap XLU transpose
    # so the store is lane-dense (1, TB) instead of masked (TB, 1).
    out_col = jnp.sum(h * w4_ref[...], axis=-1, keepdims=True) + b4_ref[...]  # (TB, 1)
    o_ref[...] = jnp.transpose(out_col).astype(o_ref.dtype)                   # (1, TB)


def init_critic_params(key):
    """Deterministic parameter init mimicking PyTorch defaults.

    nn.Embedding: N(0, 1).  nn.Linear: U(-1/sqrt(fan_in), 1/sqrt(fan_in)).
    Linear weights are stored as (in, out) (transposed vs. PyTorch).
    """
    keys = jax.random.split(key, 9)

    def linear(kw, kb, fan_in, fan_out):
        bound = 1.0 / jnp.sqrt(fan_in)
        w = jax.random.uniform(kw, (fan_in, fan_out), jnp.float32, -bound, bound)
        b = jax.random.uniform(kb, (1, fan_out), jnp.float32, -bound, bound)
        return w, b

    embedding = jax.random.normal(keys[0], (NUM_CLASSES, EMBED_DIM), jnp.float32)
    w1, b1 = linear(keys[1], keys[2], IN_FEATURES, HIDDEN)
    w2, b2 = linear(keys[3], keys[4], HIDDEN, HIDDEN)
    w3, b3 = linear(keys[5], keys[6], HIDDEN, HIDDEN)
    w4, b4 = linear(keys[7], keys[8], HIDDEN, 1)
    return dict(embedding=embedding, w1=w1, b1=b1, w2=w2, b2=b2,
                w3=w3, b3=b3, w4=w4, b4=b4)


@functools.partial(jax.jit, static_argnames=("block_b", "compute_dtype"))
def critic_forward(x, c, params, *, block_b=None, compute_dtype=jnp.bfloat16):
    """x: (B, 784) float32 or bfloat16, c: (B,) int labels in [0, 10). Returns (B, 1) f32."""
    batch = x.shape[0]
    # Accept bf16 x directly (halves the dominant HBM stream if the producer supplies
    # it); do NOT insert a standalone astype-to-bf16 pass -- that would be a net loss.
    if x.dtype not in (jnp.dtype(jnp.float32), jnp.dtype(jnp.bfloat16)):
        x = x.astype(jnp.float32)
    c2d = c.astype(jnp.int32).reshape(batch, 1)

    if block_b is None:
        block_b = _default_block_b(batch)
    else:
        block_b = max(8, _round_up(block_b, 8))
        if block_b < batch:  # multi-tile: keep (1, block_b) output blocks lane-aligned
            block_b = _round_up(block_b, 128)

    num_blocks = pl.cdiv(batch, block_b)
    padded_batch = num_blocks * block_b
    # No jnp.pad of x / c: the ragged last block reads garbage rows (masked DMA) and the
    # corresponding output lanes land in the padded output and are sliced off below.

    cd = compute_dtype
    w1 = params["w1"]
    w1x = w1[:X_DIM].astype(cd)                                   # (784, 128) bf16
    w1e = w1[X_DIM:].astype(cd)                                   # (64, 128)  bf16
    # Tiny f32 table: embedding @ W1_emb + b1, padded to 16 rows; gathered in-kernel,
    # so neither the (B, 848) concat nor a (B, 128) bias tensor ever touches HBM.
    emb_table = jnp.dot(params["embedding"].astype(cd), w1e,
                        preferred_element_type=jnp.float32) + params["b1"]   # (10, 128)
    emb_table = jnp.pad(emb_table, ((0, EMB_ROWS - NUM_CLASSES), (0, 0)))    # (16, 128)

    w2 = params["w2"].astype(cd)
    w3 = params["w3"].astype(cd)
    b2 = params["b2"].astype(jnp.float32)
    b3 = params["b3"].astype(jnp.float32)
    w4_row = params["w4"].reshape(1, HIDDEN).astype(jnp.float32)  # (1, 128)
    b4 = params["b4"].astype(jnp.float32)                         # (1, 1)

    def batch_spec(cols):
        return pl.BlockSpec((block_b, cols), lambda i: (i, 0))

    def const_spec(rows, cols):
        return pl.BlockSpec((rows, cols), lambda i: (0, 0))

    out = pl.pallas_call(
        functools.partial(critic_mlp_kernel, compute_dtype=cd),
        out_shape=jax.ShapeDtypeStruct((1, padded_batch), jnp.float32),
        grid=(num_blocks,),
        in_specs=[
            batch_spec(X_DIM),               # x tile
            batch_spec(1),                   # labels tile (4 B/row)
            const_spec(EMB_ROWS, HIDDEN),    # emb_table (resident across grid steps)
            const_spec(X_DIM, HIDDEN),       # w1x
            const_spec(HIDDEN, HIDDEN),      # w2
            const_spec(1, HIDDEN),           # b2
            const_spec(HIDDEN, HIDDEN),      # w3
            const_spec(1, HIDDEN),           # b3
            const_spec(1, HIDDEN),           # w4 row
            const_spec(1, 1),                # b4
        ],
        out_specs=pl.BlockSpec((1, block_b), lambda i: (0, i)),   # lane-dense scores
        compiler_params=pltpu.CompilerParams(
            dimension_semantics=("parallel",),   # shard batch tiles across TCs (v7x)
        ),
    )(x, c2d, emb_table, w1x, w2, b2, w3, b3, w4_row, b4)

    return out[0, :batch].reshape(batch, 1)


def critic_forward_ref(x, c, params, compute_dtype=jnp.bfloat16):
    """Pure-JAX reference mirroring the kernel's numerics (bf16 matmuls, f32 accum)."""
    cd = compute_dtype
    emb = jnp.take(params["embedding"], c, axis=0)
    h = jnp.concatenate([x.astype(jnp.float32), emb], axis=1)

    def dense(a, w, b):
        return jnp.dot(a.astype(cd), w.astype(cd),
                       preferred_element_type=jnp.float32) + b

    h = _leaky_relu(dense(h, params["w1"], params["b1"]))
    h = _leaky_relu(dense(h, params["w2"], params["b2"]))
    h = _leaky_relu(dense(h, params["w3"], params["b3"]))
    return jnp.dot(h, params["w4"],
                   preferred_element_type=jnp.float32) + params["b4"]


def critic_forward_ref_f32(x, c, params):
    """Full-f32 reference (exact module semantics) for an informational diff."""
    emb = jnp.take(params["embedding"], c, axis=0)
    h = jnp.concatenate([x.astype(jnp.float32), emb], axis=1)
    h = _leaky_relu(h @ params["w1"] + params["b1"])
    h = _leaky_relu(h @ params["w2"] + params["b2"])
    h = _leaky_relu(h @ params["w3"] + params["b3"])
    return h @ params["w4"] + params["b4"]


if __name__ == "__main__":
    key = jax.random.PRNGKey(0)
    k_param, k_x, k_c = jax.random.split(key, 3)

    params = init_critic_params(k_param)

    # batch=160 -> default block_b=128, grid=(2,): exercises the multi-tile pipeline,
    # megacore-friendly >=2 grid steps, the ragged last block, and resident weights.
    batch = 160
    x = jax.random.normal(k_x, (batch, X_DIM), jnp.float32)           # flattened 28x28
    c = jax.random.randint(k_c, (batch,), 0, NUM_CLASSES, jnp.int32)  # class labels

    out = critic_forward(x, c, params)
    out = jax.block_until_ready(out)
    assert out.shape == (batch, 1), out.shape

    ref = critic_forward_ref(x, c, params)
    max_diff = float(jnp.max(jnp.abs(out - ref)))
    assert jnp.allclose(out, ref, atol=2e-2, rtol=2e-2), f"mismatch vs reference: {max_diff}"

    # bf16-image fast path (producer-supplied bf16): identical kernel, half the HBM read.
    out_bf16 = jax.block_until_ready(critic_forward(x.astype(jnp.bfloat16), c, params))
    assert jnp.allclose(out_bf16, ref, atol=2e-2, rtol=2e-2)

    # Informational: deviation from the exact f32 module semantics (bf16 rounding).
    ref32 = critic_forward_ref_f32(x, c, params)
    _ = float(jnp.max(jnp.abs(out - ref32)))

    print("KERNEL_OK")
</pallas_src>

<mosaic_0001>
module attributes {stable_mosaic.version = 11 : i64} {
  func.func @critic_mlp_kernel(%arg0: i32, %arg1: memref<128x784xf32, #tpu.memory_space<vmem>>, %arg2: memref<128x1xi32, #tpu.memory_space<vmem>>, %arg3: memref<16x128xf32, #tpu.memory_space<vmem>>, %arg4: memref<784x128xbf16, #tpu.memory_space<vmem>>, %arg5: memref<128x128xbf16, #tpu.memory_space<vmem>>, %arg6: memref<1x128xf32, #tpu.memory_space<vmem>>, %arg7: memref<128x128xbf16, #tpu.memory_space<vmem>>, %arg8: memref<1x128xf32, #tpu.memory_space<vmem>>, %arg9: memref<1x128xf32, #tpu.memory_space<vmem>>, %arg10: memref<1x1xf32, #tpu.memory_space<vmem>>, %arg11: memref<1x128xf32, #tpu.memory_space<vmem>>) attributes {dimension_semantics = [#tpu.dimension_semantics<parallel>], iteration_bounds = array<i64: 2>, scalar_prefetch = 0 : i64, scratch_operands = 0 : i64, tpu.core_type = #tpu.core_type<tc>, window_params = [{transform_indices = @transform_0, window_bounds = array<i64: 128, 784>}, {transform_indices = @transform_1, window_bounds = array<i64: 128, 1>}, {pipeline_mode = #tpu.pipeline_mode<synchronous>, transform_indices = @transform_2, window_bounds = array<i64: 16, 128>}, {pipeline_mode = #tpu.pipeline_mode<synchronous>, transform_indices = @transform_3, window_bounds = array<i64: 784, 128>}, {pipeline_mode = #tpu.pipeline_mode<synchronous>, transform_indices = @transform_4, window_bounds = array<i64: 128, 128>}, {pipeline_mode = #tpu.pipeline_mode<synchronous>, transform_indices = @transform_5, window_bounds = array<i64: 1, 128>}, {pipeline_mode = #tpu.pipeline_mode<synchronous>, transform_indices = @transform_6, window_bounds = array<i64: 128, 128>}, {pipeline_mode = #tpu.pipeline_mode<synchronous>, transform_indices = @transform_7, window_bounds = array<i64: 1, 128>}, {pipeline_mode = #tpu.pipeline_mode<synchronous>, transform_indices = @transform_8, window_bounds = array<i64: 1, 128>}, {pipeline_mode = #tpu.pipeline_mode<synchronous>, transform_indices = @transform_9, window_bounds = array<i64: 1, 1>}, {transform_indices = @transform_10, window_bounds = array<i64: 1, 128>}]} {
    %c0 = arith.constant 0 : index
    %c0_0 = arith.constant 0 : index
    %0 = vector.load %arg1[%c0, %c0_0] : memref<128x784xf32, #tpu.memory_space<vmem>>, vector<128x784xf32>
    %1 = arith.truncf %0 : vector<128x784xf32> to vector<128x784xbf16>
    %c0_1 = arith.constant 0 : index
    %c0_2 = arith.constant 0 : index
    %2 = vector.load %arg2[%c0_1, %c0_2] : memref<128x1xi32, #tpu.memory_space<vmem>>, vector<128x1xi32>
    %3 = tpu.iota {dimensions = array<i32: 1>} : vector<128x16xi32>
    %4 = vector.broadcast %2 : vector<128x1xi32> to vector<128x16xi32>
    %5 = arith.cmpi eq, %3, %4 : vector<128x16xi32>
    %6 = arith.extui %5 : vector<128x16xi1> to vector<128x16xi32>
    %7 = arith.sitofp %6 : vector<128x16xi32> to vector<128x16xf32>
    %c0_3 = arith.constant 0 : index
    %c0_4 = arith.constant 0 : index
    %8 = vector.load %arg3[%c0_3, %c0_4] : memref<16x128xf32, #tpu.memory_space<vmem>>, vector<16x128xf32>
    %cst = arith.constant dense<0.000000e+00> : vector<128x128xf32>
    %9 = tpu.matmul %7, %8, %cst {dimension_numbers = #tpu.dot_dimension_numbers<[1], [0], [0], [1], [0, 0, 1, 1], [], []>} : vector<128x16xf32>, vector<16x128xf32>, vector<128x128xf32> -> vector<128x128xf32>
    %c0_5 = arith.constant 0 : index
    %c0_6 = arith.constant 0 : index
    %10 = vector.load %arg4[%c0_5, %c0_6] : memref<784x128xbf16, #tpu.memory_space<vmem>>, vector<784x128xbf16>
    %cst_7 = arith.constant dense<0.000000e+00> : vector<128x128xf32>
    %11 = tpu.matmul %1, %10, %cst_7 {dimension_numbers = #tpu.dot_dimension_numbers<[1], [0], [0], [1], [0, 0, 1, 1], [], []>} : vector<128x784xbf16>, vector<784x128xbf16>, vector<128x128xf32> -> vector<128x128xf32>
    %12 = arith.addf %11, %9 : vector<128x128xf32>
    %cst_8 = arith.constant 0.000000e+00 : f32
    %13 = vector.broadcast %cst_8 : f32 to vector<128x128xf32>
    %14 = arith.cmpf ogt, %12, %13 : vector<128x128xf32>
    %cst_9 = arith.constant 3.000000e-01 : f32
    %15 = vector.broadcast %cst_9 : f32 to vector<128x128xf32>
    %16 = arith.mulf %15, %12 : vector<128x128xf32>
    %17 = arith.select %14, %12, %16 : vector<128x128xi1>, vector<128x128xf32>
    %18 = arith.truncf %17 : vector<128x128xf32> to vector<128x128xbf16>
    %c0_10 = arith.constant 0 : index
    %c0_11 = arith.constant 0 : index
    %19 = vector.load %arg5[%c0_10, %c0_11] : memref<128x128xbf16, #tpu.memory_space<vmem>>, vector<128x128xbf16>
    %cst_12 = arith.constant dense<0.000000e+00> : vector<128x128xf32>
    %20 = tpu.matmul %18, %19, %cst_12 {dimension_numbers = #tpu.dot_dimension_numbers<[1], [0], [0], [1], [0, 0, 1, 1], [], []>} : vector<128x128xbf16>, vector<128x128xbf16>, vector<128x128xf32> -> vector<128x128xf32>
    %c0_13 = arith.constant 0 : index
    %c0_14 = arith.constant 0 : index
    %21 = vector.load %arg6[%c0_13, %c0_14] : memref<1x128xf32, #tpu.memory_space<vmem>>, vector<1x128xf32>
    %22 = vector.broadcast %21 : vector<1x128xf32> to vector<128x128xf32>
    %23 = arith.addf %20, %22 : vector<128x128xf32>
    %cst_15 = arith.constant 0.000000e+00 : f32
    %24 = vector.broadcast %cst_15 : f32 to vector<128x128xf32>
    %25 = arith.cmpf ogt, %23, %24 : vector<128x128xf32>
    %cst_16 = arith.constant 3.000000e-01 : f32
    %26 = vector.broadcast %cst_16 : f32 to vector<128x128xf32>
    %27 = arith.mulf %26, %23 : vector<128x128xf32>
    %28 = arith.select %25, %23, %27 : vector<128x128xi1>, vector<128x128xf32>
    %29 = arith.truncf %28 : vector<128x128xf32> to vector<128x128xbf16>
    %c0_17 = arith.constant 0 : index
    %c0_18 = arith.constant 0 : index
    %30 = vector.load %arg7[%c0_17, %c0_18] : memref<128x128xbf16, #tpu.memory_space<vmem>>, vector<128x128xbf16>
    %cst_19 = arith.constant dense<0.000000e+00> : vector<128x128xf32>
    %31 = tpu.matmul %29, %30, %cst_19 {dimension_numbers = #tpu.dot_dimension_numbers<[1], [0], [0], [1], [0, 0, 1, 1], [], []>} : vector<128x128xbf16>, vector<128x128xbf16>, vector<128x128xf32> -> vector<128x128xf32>
    %c0_20 = arith.constant 0 : index
    %c0_21 = arith.constant 0 : index
    %32 = vector.load %arg8[%c0_20, %c0_21] : memref<1x128xf32, #tpu.memory_space<vmem>>, vector<1x128xf32>
    %33 = vector.broadcast %32 : vector<1x128xf32> to vector<128x128xf32>
    %34 = arith.addf %31, %33 : vector<128x128xf32>
    %cst_22 = arith.constant 0.000000e+00 : f32
    %35 = vector.broadcast %cst_22 : f32 to vector<128x128xf32>
    %36 = arith.cmpf ogt, %34, %35 : vector<128x128xf32>
    %cst_23 = arith.constant 3.000000e-01 : f32
    %37 = vector.broadcast %cst_23 : f32 to vector<128x128xf32>
    %38 = arith.mulf %37, %34 : vector<128x128xf32>
    %39 = arith.select %36, %34, %38 : vector<128x128xi1>, vector<128x128xf32>
    %c0_24 = arith.constant 0 : index
    %c0_25 = arith.constant 0 : index
    %40 = vector.load %arg9[%c0_24, %c0_25] : memref<1x128xf32, #tpu.memory_space<vmem>>, vector<1x128xf32>
    %41 = vector.broadcast %40 : vector<1x128xf32> to vector<128x128xf32>
    %42 = arith.mulf %39, %41 : vector<128x128xf32>
    %cst_26 = arith.constant dense<0.000000e+00> : vector<128xf32>
    %43 = vector.multi_reduction <add>, %42, %cst_26 [1] : vector<128x128xf32> to vector<128xf32>
    %44 = vector.shape_cast %43 : vector<128xf32> to vector<128x1xf32>
    %c0_27 = arith.constant 0 : index
    %c0_28 = arith.constant 0 : index
    %45 = vector.load %arg10[%c0_27, %c0_28] : memref<1x1xf32, #tpu.memory_space<vmem>>, vector<1x1xf32>
    %46 = vector.broadcast %45 : vector<1x1xf32> to vector<128x1xf32>
    %47 = arith.addf %44, %46 : vector<128x1xf32>
    %48 = tpu.transpose %47, [1, 0] : vector<128x1xf32> -> vector<1x128xf32>
    %c0_29 = arith.constant 0 : index
    %c0_30 = arith.constant 0 : index
    %49 = vector.load %arg11[%c0_29, %c0_30] : memref<1x128xf32, #tpu.memory_space<vmem>>, vector<1x128xf32>
    tpu.vector_store %arg11[%c0_29, %c0_30], %48 {strides = array<i32>} : memref<1x128xf32, #tpu.memory_space<vmem>>, vector<1x128xf32>,
    return
  }
  func.func @transform_0(%arg0: i32) -> (i32, i32) {
    %c0_i32 = arith.constant 0 : i32
    %c0_i32_0 = arith.constant 0 : i32
    return %arg0, %c0_i32 : i32, i32
  }
  func.func @transform_1(%arg0: i32) -> (i32, i32) {
    %c0_i32 = arith.constant 0 : i32
    %c0_i32_0 = arith.constant 0 : i32
    return %arg0, %c0_i32 : i32, i32
  }
  func.func @transform_2(%arg0: i32) -> (i32, i32) {
    %c0_i32 = arith.constant 0 : i32
    %c0_i32_0 = arith.constant 0 : i32
    %c0_i32_1 = arith.constant 0 : i32
    return %c0_i32, %c0_i32_0 : i32, i32
  }
  func.func @transform_3(%arg0: i32) -> (i32, i32) {
    %c0_i32 = arith.constant 0 : i32
    %c0_i32_0 = arith.constant 0 : i32
    %c0_i32_1 = arith.constant 0 : i32
    return %c0_i32, %c0_i32_0 : i32, i32
  }
  func.func @transform_4(%arg0: i32) -> (i32, i32) {
    %c0_i32 = arith.constant 0 : i32
    %c0_i32_0 = arith.constant 0 : i32
    %c0_i32_1 = arith.constant 0 : i32
    return %c0_i32, %c0_i32_0 : i32, i32
  }
  func.func @transform_5(%arg0: i32) -> (i32, i32) {
    %c0_i32 = arith.constant 0 : i32
    %c0_i32_0 = arith.constant 0 : i32
    %c0_i32_1 = arith.constant 0 : i32
    return %c0_i32, %c0_i32_0 : i32, i32
  }
  func.func @transform_6(%arg0: i32) -> (i32, i32) {
    %c0_i32 = arith.constant 0 : i32
    %c0_i32_0 = arith.constant 0 : i32
    %c0_i32_1 = arith.constant 0 : i32
    return %c0_i32, %c0_i32_0 : i32, i32
  }
  func.func @transform_7(%arg0: i32) -> (i32, i32) {
    %c0_i32 = arith.constant 0 : i32
    %c0_i32_0 = arith.constant 0 : i32
    %c0_i32_1 = arith.constant 0 : i32
    return %c0_i32, %c0_i32_0 : i32, i32
  }
  func.func @transform_8(%arg0: i32) -> (i32, i32) {
    %c0_i32 = arith.constant 0 : i32
    %c0_i32_0 = arith.constant 0 : i32
    %c0_i32_1 = arith.constant 0 : i32
    return %c0_i32, %c0_i32_0 : i32, i32
  }
  func.func @transform_9(%arg0: i32) -> (i32, i32) {
    %c0_i32 = arith.constant 0 : i32
    %c0_i32_0 = arith.constant 0 : i32
    %c0_i32_1 = arith.constant 0 : i32
    return %c0_i32, %c0_i32_0 : i32, i32
  }
  func.func @transform_10(%arg0: i32) -> (i32, i32) {
    %c0_i32 = arith.constant 0 : i32
    %c0_i32_0 = arith.constant 0 : i32
    return %c0_i32, %arg0 : i32, i32
  }
}

</mosaic_0001>

<llo_original>
// kernel: critic_forward.1
$region0: #{critic_forward.1}
  #allocation0 [shape = 'u32[]', space=smem, size = 0x4, offset = 0x4, fixed_abs, tag = 'smem constant byte address 0x4 - core index']
  #allocation1 [shape = 'u32[144,128]{1,0:T(1,128)}', space=vmem, size = 0x12000, scoped, tag = 'internal scratch']
  #allocation2 [shape = 'f32[1,1]{1,0:T(1,128)S(1)}', space=vmem, size = 0x200, scoped, tag = 'scoped memory for critic_forward.1']
  %s0 = inlined_call_operand.vmem [shape: f32[160,784], index: 0, kind: input, shape index: {}]
  %s1 = inlined_call_operand.vmem [shape: s32[160,1], index: 1, kind: input, shape index: {}]
  %s2 = inlined_call_operand.vmem [shape: f32[16,128], index: 2, kind: input, shape index: {}]
  %s3 = inlined_call_operand.vmem [shape: bf16[784,128], index: 3, kind: input, shape index: {}]
  %s4 = inlined_call_operand.vmem [shape: bf16[128,128], index: 4, kind: input, shape index: {}]
  %s5 = inlined_call_operand.vmem [shape: f32[1,128], index: 5, kind: input, shape index: {}]
  %s6 = inlined_call_operand.vmem [shape: bf16[128,128], index: 6, kind: input, shape index: {}]
  %s7 = inlined_call_operand.vmem [shape: f32[1,128], index: 7, kind: input, shape index: {}]
  %s8 = inlined_call_operand.vmem [shape: f32[1,128], index: 8, kind: input, shape index: {}]
  %s9 = inlined_call_operand.<no memory space> [shape: f32[1,1], index: 9, kind: input, shape index: {}]
  %s10 = inlined_call_operand.vmem [shape: f32[1,256], index: 10, kind: output, shape index: {}]
  %s11 = sld [smem:[#allocation0]]
  $region73: #{critic_forward.1} parent=0
    _
  %s13 = ssub.s32 1, %s11
  %s14 = scalar_select 0, %s13, %s11
  %v15 = vstv %s9
  %16 = vst [vmem:[#allocation2] sm:$0x1] %v15
  loop: start=0, step=1, limit=4
  $region2: #{critic_forward.1} parent=0 // loop_pre_header
    _
  $region3: #{critic_forward.1} parent=0 // loop_header
    %s18 = sphi 0, %s22
    %p19 = scmp.ge.s32.totalorder %s18, 4
    %s28 = sphi 0, %s30
    %s31 = sphi 0, %s28
    %s32 = sphi 0, %s31
    %s48 = sphi 0, %s32
    %s54 = sphi 0, %s56
    %s57 = sphi 0, %s54
    %s58 = sphi 0, %s57
    %s74 = sphi 0, %s58
    %s78 = sphi 0, %s78
    %s80 = sphi 0, %s78
    %s81 = sphi 0, %s80
    %s95 = sphi 0, %s81
    %s99 = sphi 0, %s99
    %s101 = sphi 0, %s99
    %s102 = sphi 0, %s101
    %s116 = sphi 0, %s102
    %s120 = sphi 0, %s120
    %s122 = sphi 0, %s120
    %s123 = sphi 0, %s122
    %s137 = sphi 0, %s123
    %s141 = sphi 0, %s141
    %s143 = sphi 0, %s141
    %s144 = sphi 0, %s143
    %s158 = sphi 0, %s144
    %s162 = sphi 0, %s162
    %s164 = sphi 0, %s162
    %s165 = sphi 0, %s164
    %s179 = sphi 0, %s165
    %s183 = sphi 0, %s183
    %s185 = sphi 0, %s183
    %s186 = sphi 0, %s185
    %s200 = sphi 0, %s186
    %s204 = sphi 0, %s204
    %s206 = sphi 0, %s204
    %s207 = sphi 0, %s206
    %s221 = sphi 0, %s207
    %s225 = sphi 0, %s225
    %s227 = sphi 0, %s225
    %s228 = sphi 0, %s227
    %s242 = sphi 0, %s228
    %s248 = sphi 0, %s250
    %s251 = sphi 0, %s248
    %s252 = sphi 0, %s251
    %s268 = sphi 0, %s252
  $region4: #{critic_forward.1} parent=0 // loop_header_branch
    %21 = sbr.rel (%p19) target = $region8
  $region5: #{critic_forward.1} parent=0 // loop_body
    %s23 = ssub.s32 %s18, 1
    %s24 = ssub.s32 %s18, 2
    %s25 = sadd.s32 %s18, 1
    %s26 = ssub.s32 %s18, %s25
    %p27 = scmp.eq.s32.totalorder %s26, 0
    %s29 = sadd.s32 %s28, 1
    %s30 = scalar_select %p27, %s28, %s29
    %p33 = pneg %p27
    %p34 = scmp.eq.s32.totalorder %s18, 1
    %p35 = por %p33, %p34
    %p36 = scmp.ne.s32.totalorder %s28, %s31
    %p37 = scmp.eq.s32.totalorder %s18, 0
    %p38 = por %p36, %p37
    %p39 = scmp.ne.s32.totalorder %s28, %s31
    %p40 = scmp.eq.s32.totalorder %s23, 1
    %p41 = por %p39, %p40
    %p42 = scmp.ne.s32.totalorder %s31, %s32
    %p43 = scmp.eq.s32.totalorder %s23, 0
    %p44 = por %p42, %p43
    %p45 = scmp.ne.s32.totalorder %s31, %s32
    %p46 = scmp.eq.s32.totalorder %s24, 1
    %p47 = por %p45, %p46
    %p49 = scmp.ne.s32.totalorder %s32, %s48
    %p50 = scmp.eq.s32.totalorder %s24, 0
    %p51 = por %p49, %p50
    %s52 = ssub.s32 %s18, %s25
    %p53 = scmp.eq.s32.totalorder %s52, 0
    %s55 = sadd.s32 %s54, 1
    %s56 = scalar_select %p53, %s54, %s55
    %p59 = pneg %p53
    %p60 = scmp.eq.s32.totalorder %s18, 1
    %p61 = por %p59, %p60
    %p62 = scmp.ne.s32.totalorder %s54, %s57
    %p63 = scmp.eq.s32.totalorder %s18, 0
    %p64 = por %p62, %p63
    %p65 = scmp.ne.s32.totalorder %s54, %s57
    %p66 = scmp.eq.s32.totalorder %s23, 1
    %p67 = por %p65, %p66
    %p68 = scmp.ne.s32.totalorder %s57, %s58
    %p69 = scmp.eq.s32.totalorder %s23, 0
    %p70 = por %p68, %p69
    %p71 = scmp.ne.s32.totalorder %s57, %s58
    %p72 = scmp.eq.s32.totalorder %s24, 1
    %p73 = por %p71, %p72
    %p75 = scmp.ne.s32.totalorder %s58, %s74
    %p76 = scmp.eq.s32.totalorder %s24, 0
    %p77 = por %p75, %p76
    %s79 = sadd.s32 %s78, 1
    %p82 = scmp.eq.s32.totalorder %s18, 1
    %p83 = scmp.ne.s32.totalorder %s78, %s80
    %p84 = scmp.eq.s32.totalorder %s18, 0
    %p85 = por %p83, %p84
    %p86 = scmp.ne.s32.totalorder %s78, %s80
    %p87 = scmp.eq.s32.totalorder %s23, 1
    %p88 = por %p86, %p87
    %p89 = scmp.ne.s32.totalorder %s80, %s81
    %p90 = scmp.eq.s32.totalorder %s23, 0
    %p91 = por %p89, %p90
    %p92 = scmp.ne.s32.totalorder %s80, %s81
    %p93 = scmp.eq.s32.totalorder %s24, 1
    %p94 = por %p92, %p93
    %p96 = scmp.ne.s32.totalorder %s81, %s95
    %p97 = scmp.eq.s32.totalorder %s24, 0
    %p98 = por %p96, %p97
    %s100 = sadd.s32 %s99, 1
    %p103 = scmp.eq.s32.totalorder %s18, 1
    %p104 = scmp.ne.s32.totalorder %s99, %s101
    %p105 = scmp.eq.s32.totalorder %s18, 0
    %p106 = por %p104, %p105
    %p107 = scmp.ne.s32.totalorder %s99, %s101
    %p108 = scmp.eq.s32.totalorder %s23, 1
    %p109 = por %p107, %p108
    %p110 = scmp.ne.s32.totalorder %s101, %s102
    %p111 = scmp.eq.s32.totalorder %s23, 0
    %p112 = por %p110, %p111
    %p113 = scmp.ne.s32.totalorder %s101, %s102
    %p114 = scmp.eq.s32.totalorder %s24, 1
    %p115 = por %p113, %p114
    %p117 = scmp.ne.s32.totalorder %s102, %s116
    %p118 = scmp.eq.s32.totalorder %s24, 0
    %p119 = por %p117, %p118
    %s121 = sadd.s32 %s120, 1
    %p124 = scmp.eq.s32.totalorder %s18, 1
    %p125 = scmp.ne.s32.totalorder %s120, %s122
    %p126 = scmp.eq.s32.totalorder %s18, 0
    %p127 = por %p125, %p126
    %p128 = scmp.ne.s32.totalorder %s120, %s122
    %p129 = scmp.eq.s32.totalorder %s23, 1
    %p130 = por %p128, %p129
    %p131 = scmp.ne.s32.totalorder %s122, %s123
    %p132 = scmp.eq.s32.totalorder %s23, 0
    %p133 = por %p131, %p132
    %p134 = scmp.ne.s32.totalorder %s122, %s123
    %p135 = scmp.eq.s32.totalorder %s24, 1
    %p136 = por %p134, %p135
    %p138 = scmp.ne.s32.totalorder %s123, %s137
    %p139 = scmp.eq.s32.totalorder %s24, 0
    %p140 = por %p138, %p139
    %s142 = sadd.s32 %s141, 1
    %p145 = scmp.eq.s32.totalorder %s18, 1
    %p146 = scmp.ne.s32.totalorder %s141, %s143
    %p147 = scmp.eq.s32.totalorder %s18, 0
    %p148 = por %p146, %p147
    %p149 = scmp.ne.s32.totalorder %s141, %s143
    %p150 = scmp.eq.s32.totalorder %s23, 1
    %p151 = por %p149, %p150
    %p152 = scmp.ne.s32.totalorder %s143, %s144
    %p153 = scmp.eq.s32.totalorder %s23, 0
    %p154 = por %p152, %p153
    %p155 = scmp.ne.s32.totalorder %s143, %s144
    %p156 = scmp.eq.s32.totalorder %s24, 1
    %p157 = por %p155, %p156
    %p159 = scmp.ne.s32.totalorder %s144, %s158
    %p160 = scmp.eq.s32.totalorder %s24, 0
    %p161 = por %p159, %p160
    %s163 = sadd.s32 %s162, 1
    %p166 = scmp.eq.s32.totalorder %s18, 1
    %p167 = scmp.ne.s32.totalorder %s162, %s164
    %p168 = scmp.eq.s32.totalorder %s18, 0
    %p169 = por %p167, %p168
    %p170 = scmp.ne.s32.totalorder %s162, %s164
    %p171 = scmp.eq.s32.totalorder %s23, 1
    %p172 = por %p170, %p171
    %p173 = scmp.ne.s32.totalorder %s164, %s165
    %p174 = scmp.eq.s32.totalorder %s23, 0
    %p175 = por %p173, %p174
    %p176 = scmp.ne.s32.totalorder %s164, %s165
    %p177 = scmp.eq.s32.totalorder %s24, 1
    %p178 = por %p176, %p177
    %p180 = scmp.ne.s32.totalorder %s165, %s179
    %p181 = scmp.eq.s32.totalorder %s24, 0
    %p182 = por %p180, %p181
    %s184 = sadd.s32 %s183, 1
    %p187 = scmp.eq.s32.totalorder %s18, 1
    %p188 = scmp.ne.s32.totalorder %s183, %s185
    %p189 = scmp.eq.s32.totalorder %s18, 0
    %p190 = por %p188, %p189
    %p191 = scmp.ne.s32.totalorder %s183, %s185
    %p192 = scmp.eq.s32.totalorder %s23, 1
    %p193 = por %p191, %p192
    %p194 = scmp.ne.s32.totalorder %s185, %s186
    %p195 = scmp.eq.s32.totalorder %s23, 0
    %p196 = por %p194, %p195
    %p197 = scmp.ne.s32.totalorder %s185, %s186
    %p198 = scmp.eq.s32.totalorder %s24, 1
    %p199 = por %p197, %p198
    %p201 = scmp.ne.s32.totalorder %s186, %s200
    %p202 = scmp.eq.s32.totalorder %s24, 0
    %p203 = por %p201, %p202
    %s205 = sadd.s32 %s204, 1
    %p208 = scmp.eq.s32.totalorder %s18, 1
    %p209 = scmp.ne.s32.totalorder %s204, %s206
    %p210 = scmp.eq.s32.totalorder %s18, 0
    %p211 = por %p209, %p210
    %p212 = scmp.ne.s32.totalorder %s204, %s206
    %p213 = scmp.eq.s32.totalorder %s23, 1
    %p214 = por %p212, %p213
    %p215 = scmp.ne.s32.totalorder %s206, %s207
    %p216 = scmp.eq.s32.totalorder %s23, 0
    %p217 = por %p215, %p216
    %p218 = scmp.ne.s32.totalorder %s206, %s207
    %p219 = scmp.eq.s32.totalorder %s24, 1
    %p220 = por %p218, %p219
    %p222 = scmp.ne.s32.totalorder %s207, %s221
    %p223 = scmp.eq.s32.totalorder %s24, 0
    %p224 = por %p222, %p223
    %s226 = sadd.s32 %s225, 1
    %p229 = scmp.eq.s32.totalorder %s18, 1
    %p230 = scmp.ne.s32.totalorder %s225, %s227
    %p231 = scmp.eq.s32.totalorder %s18, 0
    %p232 = por %p230, %p231
    %p233 = scmp.ne.s32.totalorder %s225, %s227
    %p234 = scmp.eq.s32.totalorder %s23, 1
    %p235 = por %p233, %p234
    %p236 = scmp.ne.s32.totalorder %s227, %s228
    %p237 = scmp.eq.s32.totalorder %s23, 0
    %p238 = por %p236, %p237
    %p239 = scmp.ne.s32.totalorder %s227, %s228
    %p240 = scmp.eq.s32.totalorder %s24, 1
    %p241 = por %p239, %p240
    %p243 = scmp.ne.s32.totalorder %s228, %s242
    %p244 = scmp.eq.s32.totalorder %s24, 0
    %p245 = por %p243, %p244
    %s246 = ssub.s32 %s18, %s25
    %p247 = scmp.eq.s32.totalorder %s246, 0
    %s249 = sadd.s32 %s248, 1
    %s250 = scalar_select %p247, %s248, %s249
    %p253 = pneg %p247
    %p254 = scmp.eq.s32.totalorder %s18, 1
    %p255 = por %p253, %p254
    %p256 = scmp.ne.s32.totalorder %s248, %s251
    %p257 = scmp.eq.s32.totalorder %s18, 0
    %p258 = por %p256, %p257
    %p259 = scmp.ne.s32.totalorder %s248, %s251
    %p260 = scmp.eq.s32.totalorder %s23, 1
    %p261 = por %p259, %p260
    %p262 = scmp.ne.s32.totalorder %s251, %s252
    %p263 = scmp.eq.s32.totalorder %s23, 0
    %p264 = por %p262, %p263
    %p265 = scmp.ne.s32.totalorder %s251, %s252
    %p266 = scmp.eq.s32.totalorder %s24, 1
    %p267 = por %p265, %p266
    %p269 = scmp.ne.s32.totalorder %s252, %s268
    %p270 = scmp.eq.s32.totalorder %s24, 0
    %p271 = por %p269, %p270
    %p272 = scmp.le.s32.totalorder 1, %s18
    %p273 = scmp.lt.s32.totalorder %s18, 3
    %p274 = pnand %p272, %p273
    %p275 = pneg %p274
    // Predicated region
    $region9: #{critic_forward.1} parent=5 // pred_check
      _
    $region10: #{critic_forward.1} parent=5 // pred_check_branch
      %277 = sbr.rel (%p274) target = $region12
    $region11: #{critic_forward.1} parent=5 // pred_region
      %s278 = ssub.s32 %s18, 1
      // Predicated region
      $region13: #{critic_forward.1} parent=11 // pred_check
        %p279 = pneg %p91
      $region14: #{critic_forward.1} parent=11 // pred_check_branch
        %281 = sbr.rel (%p279) target = $region16
      $region15: #{critic_forward.1} parent=11 // pred_region
        _
      $region16: #{critic_forward.1} parent=11 // pred_fallthru
        _
      // Predicated region
      $region17: #{critic_forward.1} parent=11 // pred_check
        %p282 = pneg %p112
      $region18: #{critic_forward.1} parent=11 // pred_check_branch
        %284 = sbr.rel (%p282) target = $region20
      $region19: #{critic_forward.1} parent=11 // pred_region
        _
      $region20: #{critic_forward.1} parent=11 // pred_fallthru
        _
      // Predicated region
      $region21: #{critic_forward.1} parent=11 // pred_check
        %p285 = pneg %p133
      $region22: #{critic_forward.1} parent=11 // pred_check_branch
        %287 = sbr.rel (%p285) target = $region24
      $region23: #{critic_forward.1} parent=11 // pred_region
        _
      $region24: #{critic_forward.1} parent=11 // pred_fallthru
        _
      // Predicated region
      $region25: #{critic_forward.1} parent=11 // pred_check
        %p288 = pneg %p154
      $region26: #{critic_forward.1} parent=11 // pred_check_branch
        %290 = sbr.rel (%p288) target = $region28
      $region27: #{critic_forward.1} parent=11 // pred_region
        _
      $region28: #{critic_forward.1} parent=11 // pred_fallthru
        _
      // Predicated region
      $region29: #{critic_forward.1} parent=11 // pred_check
        %p291 = pneg %p175
      $region30: #{critic_forward.1} parent=11 // pred_check_branch
        %293 = sbr.rel (%p291) target = $region32
      $region31: #{critic_forward.1} parent=11 // pred_region
        _
      $region32: #{critic_forward.1} parent=11 // pred_fallthru
        _
      // Predicated region
      $region33: #{critic_forward.1} parent=11 // pred_check
        %p294 = pneg %p196
      $region34: #{critic_forward.1} parent=11 // pred_check_branch
        %296 = sbr.rel (%p294) target = $region36
      $region35: #{critic_forward.1} parent=11 // pred_region
        _
      $region36: #{critic_forward.1} parent=11 // pred_fallthru
        _
      // Predicated region
      $region37: #{critic_forward.1} parent=11 // pred_check
        %p297 = pneg %p217
      $region38: #{critic_forward.1} parent=11 // pred_check_branch
        %299 = sbr.rel (%p297) target = $region40
      $region39: #{critic_forward.1} parent=11 // pred_region
        _
      $region40: #{critic_forward.1} parent=11 // pred_fallthru
        _
      // Predicated region
      $region41: #{critic_forward.1} parent=11 // pred_check
        %p300 = pneg %p238
      $region42: #{critic_forward.1} parent=11 // pred_check_branch
        %302 = sbr.rel (%p300) target = $region44
      $region43: #{critic_forward.1} parent=11 // pred_region
        _
      $region44: #{critic_forward.1} parent=11 // pred_fallthru
        _
    $region12: #{critic_forward.1} parent=5 // pred_fallthru
      _
    %p303 = scmp.lt.s32.totalorder %s18, 2
    // Predicated region
    $region45: #{critic_forward.1} parent=5 // pred_check
      %p304 = pneg %p303
    $region46: #{critic_forward.1} parent=5 // pred_check_branch
      %306 = sbr.rel (%p304) target = $region48
    $region47: #{critic_forward.1} parent=5 // pred_region
      // Predicated region
      $region49: #{critic_forward.1} parent=47 // pred_check
        %p307 = pneg %p38
      $region50: #{critic_forward.1} parent=47 // pred_check_branch
        %309 = sbr.rel (%p307) target = $region52
      $region51: #{critic_forward.1} parent=47 // pred_region
        %s310 = smul.u32 16, %s18
        %s311 = ssub.s32 20, %s310
        %p312 = scmp.lt.s32.totalorder %s311, 16
        %s313 = scalar_select %p312, %s311, 16
        %s314 = smul.u32 128, %s313
        %s315 = smul.u32 %s314, 7
        %p316 = scmp.lt.s32.totalorder %s310, 19
        %s317 = scalar_select %p316, %s310, 19
        %s318 = smul.addr %s317, 7
        %s319 = smul.addr %s318, 8
        %s320 = scalar_lea.vmem %s0, %s319
        %s321 = smul.u32 16, %s18
        %s322 = ssub.s32 20, %s321
        %p323 = scmp.lt.s32.totalorder %s322, 16
        %s324 = scalar_select %p323, %s322, 16
        %s325 = smul.u32 128, %s324
        %s326 = smul.u32 %s325, 7
      $region52: #{critic_forward.1} parent=47 // pred_fallthru
        _
      // Predicated region
      $region53: #{critic_forward.1} parent=47 // pred_check
        %p327 = pneg %p64
      $region54: #{critic_forward.1} parent=47 // pred_check_branch
        %329 = sbr.rel (%p327) target = $region56
      $region55: #{critic_forward.1} parent=47 // pred_region
        %s330 = smul.u32 16, %s18
        %s331 = ssub.s32 20, %s330
        %p332 = scmp.lt.s32.totalorder %s331, 16
        %s333 = scalar_select %p332, %s331, 16
        %s334 = smul.u32 128, %s333
        %p335 = scmp.lt.s32.totalorder %s330, 19
        %s336 = scalar_select %p335, %s330, 19
        %s337 = smul.addr %s336, 8
        %s338 = scalar_lea.vmem %s1, %s337
        %s339 = smul.u32 16, %s18
        %s340 = ssub.s32 20, %s339
        %p341 = scmp.lt.s32.totalorder %s340, 16
        %s342 = scalar_select %p341, %s340, 16
        %s343 = smul.u32 128, %s342
      $region56: #{critic_forward.1} parent=47 // pred_fallthru
        _
    $region48: #{critic_forward.1} parent=5 // pred_fallthru
      _
    %p344 = scmp.le.s32.totalorder 1, %s18
    %p345 = scmp.lt.s32.totalorder %s18, 3
    %p346 = pnand %p344, %p345
    %p347 = pneg %p346
    // Predicated region
    $region57: #{critic_forward.1} parent=5 // pred_check
      _
    $region58: #{critic_forward.1} parent=5 // pred_check_branch
      %349 = sbr.rel (%p346) target = $region60
    $region59: #{critic_forward.1} parent=5 // pred_region
      %s350 = ssub.s32 %s18, 1
      %s351 = smul.u32 16, %s23
      %s352 = ssub.s32 20, %s351
      %p353 = scmp.lt.s32.totalorder %s352, 16
      %s354 = scalar_select %p353, %s352, 16
      %s355 = smul.u32 128, %s354
      %s356 = smul.u32 %s355, 7
      %p357 = scmp.lt.s32.totalorder %s351, 19
      %s358 = scalar_select %p357, %s351, 19
      %s359 = smul.addr %s358, 7
      %s360 = smul.addr %s359, 8
      %s361 = scalar_lea.vmem %s0, %s360
      %p362 = pneg %p44
      %p363 = pneg %p41
      %s364 = smul.u32 16, %s23
      %s365 = ssub.s32 20, %s364
      %p366 = scmp.lt.s32.totalorder %s365, 16
      %s367 = scalar_select %p366, %s365, 16
      %s368 = smul.u32 128, %s367
      %p369 = scmp.lt.s32.totalorder %s364, 19
      %s370 = scalar_select %p369, %s364, 19
      %s371 = smul.addr %s370, 8
      %s372 = scalar_lea.vmem %s1, %s371
      %p373 = pneg %p70
      %p374 = pneg %p67
      %p375 = pneg %p91
      %p376 = pneg %p88
      %p377 = pneg %p112
      %p378 = pneg %p109
      %p379 = pneg %p133
      %p380 = pneg %p130
      %p381 = pneg %p154
      %p382 = pneg %p151
      %p383 = pneg %p175
      %p384 = pneg %p172
      %p385 = pneg %p196
      %p386 = pneg %p193
      %p387 = pneg %p217
      %p388 = pneg %p214
      %p389 = pneg %p238
      %p390 = pneg %p235
      %p391 = pneg %p264
      %p392 = pneg %p261
      %p393 = scmp.lt.s32.totalorder %s23, 1
      %s394 = scalar_select %p393, %s23, 1
      %s395 = scalar_lea.vmem %s10, %s394
      %s396 = smul.u32 16, %s23
      %s397 = ssub.s32 20, %s396
      %p398 = scmp.lt.s32.totalorder %s397, 16
      %s399 = scalar_select %p398, %s397, 16
      %s400 = smul.u32 128, %s399
      %s401 = smul.u32 %s400, 7
      %p402 = scmp.lt.s32.totalorder %s396, 19
      %s403 = scalar_select %p402, %s396, 19
      %s404 = smul.addr %s403, 7
      %s405 = smul.addr %s404, 8
      %s406 = scalar_lea.vmem %s0, %s405
      %s407 = smul.u32 16, %s23
      %s408 = ssub.s32 20, %s407
      %p409 = scmp.lt.s32.totalorder %s408, 16
      %s410 = scalar_select %p409, %s408, 16
      %s411 = smul.u32 128, %s410
      %s412 = smul.u32 %s411, 7
      %s413 = smul.u32 16, %s23
      %s414 = ssub.s32 20, %s413
      %p415 = scmp.lt.s32.totalorder %s414, 16
      %s416 = scalar_select %p415, %s414, 16
      %s417 = smul.u32 128, %s416
      %p418 = scmp.lt.s32.totalorder %s413, 19
      %s419 = scalar_select %p418, %s413, 19
      %s420 = smul.addr %s419, 8
      %s421 = scalar_lea.vmem %s1, %s420
      %s422 = smul.u32 16, %s23
      %s423 = ssub.s32 20, %s422
      %p424 = scmp.lt.s32.totalorder %s423, 16
      %s425 = scalar_select %p424, %s423, 16
      %s426 = smul.u32 128, %s425
      %p427 = scmp.lt.s32.totalorder %s23, 1
      %s428 = scalar_select %p427, %s23, 1
      %s429 = scalar_lea.vmem %s10, %s428
      %v431 = vld [vmem:[%s406] sm:$0xff]
      %v432 = vld [vmem:[%s406 + $0x8] sm:$0xff]
      %v433 = vld [vmem:[%s406 + $0x10] sm:$0xff]
      %v434 = vld [vmem:[%s406 + $0x18] sm:$0xff]
      %v435 = vld [vmem:[%s406 + $0x20] sm:$0xff]
      %v436 = vld [vmem:[%s406 + $0x28] sm:$0xff]
      %v437 = vld [vmem:[%s406 + $0x30] sm:$0xff]
      %v438 = vld [vmem:[%s406 + $0x38] sm:$0xff]
      %v439 = vld [vmem:[%s406 + $0x40] sm:$0xff]
      %v440 = vld [vmem:[%s406 + $0x48] sm:$0xff]
      %v441 = vld [vmem:[%s406 + $0x50] sm:$0xff]
      %v442 = vld [vmem:[%s406 + $0x58] sm:$0xff]
      %v443 = vld [vmem:[%s406 + $0x60] sm:$0xff]
      %v444 = vld [vmem:[%s406 + $0x68] sm:$0xff]
      %v445 = vld [vmem:[%s406 + $0x70] sm:$0xff]
      %v446 = vld [vmem:[%s406 + $0x78] sm:$0xff]
      %v447 = vld [vmem:[%s406 + $0x80] sm:$0xff]
      %v448 = vld [vmem:[%s406 + $0x88] sm:$0xff]
      %v449 = vld [vmem:[%s406 + $0x90] sm:$0xff]
      %v450 = vld [vmem:[%s406 + $0x98] sm:$0xff]
      %v451 = vld [vmem:[%s406 + $0xa0] sm:$0xff]
      %v452 = vld [vmem:[%s406 + $0xa8] sm:$0xff]
      %v453 = vld [vmem:[%s406 + $0xb0] sm:$0xff]
      %v454 = vld [vmem:[%s406 + $0xb8] sm:$0xff]
      %v455 = vld [vmem:[%s406 + $0xc0] sm:$0xff]
      %v456 = vld [vmem:[%s406 + $0xc8] sm:$0xff]
      %v457 = vld [vmem:[%s406 + $0xd0] sm:$0xff]
      %v458 = vld [vmem:[%s406 + $0xd8] sm:$0xff]
      %v459 = vld [vmem:[%s406 + $0xe0] sm:$0xff]
      %v460 = vld [vmem:[%s406 + $0xe8] sm:$0xff]
      %v461 = vld [vmem:[%s406 + $0xf0] sm:$0xff]
      %v462 = vld [vmem:[%s406 + $0xf8] sm:$0xff]
      %v463 = vld [vmem:[%s406 + $0x100] sm:$0xff]
      %v464 = vld [vmem:[%s406 + $0x108] sm:$0xff]
      %v465 = vld [vmem:[%s406 + $0x110] sm:$0xff]
      %v466 = vld [vmem:[%s406 + $0x118] sm:$0xff]
      %v467 = vld [vmem:[%s406 + $0x120] sm:$0xff]
      %v468 = vld [vmem:[%s406 + $0x128] sm:$0xff]
      %v469 = vld [vmem:[%s406 + $0x130] sm:$0xff]
      %v470 = vld [vmem:[%s406 + $0x138] sm:$0xff]
      %v471 = vld [vmem:[%s406 + $0x140] sm:$0xff]
      %v472 = vld [vmem:[%s406 + $0x148] sm:$0xff]
      %v473 = vld [vmem:[%s406 + $0x150] sm:$0xff]
      %v474 = vld [vmem:[%s406 + $0x158] sm:$0xff]
      %v475 = vld [vmem:[%s406 + $0x160] sm:$0xff]
      %v476 = vld [vmem:[%s406 + $0x168] sm:$0xff]
      %v477 = vld [vmem:[%s406 + $0x170] sm:$0xff]
      %v478 = vld [vmem:[%s406 + $0x178] sm:$0xff]
      %v479 = vld [vmem:[%s406 + $0x180] sm:$0xff]
      %v480 = vld [vmem:[%s406 + $0x188] sm:$0xff]
      %v481 = vld [vmem:[%s406 + $0x190] sm:$0xff]
      %v482 = vld [vmem:[%s406 + $0x198] sm:$0xff]
      %v483 = vld [vmem:[%s406 + $0x1a0] sm:$0xff]
      %v484 = vld [vmem:[%s406 + $0x1a8] sm:$0xff]
      %v485 = vld [vmem:[%s406 + $0x1b0] sm:$0xff]
      %v486 = vld [vmem:[%s406 + $0x1b8] sm:$0xff]
      %v487 = vld [vmem:[%s406 + $0x1c0] sm:$0xff]
      %v488 = vld [vmem:[%s406 + $0x1c8] sm:$0xff]
      %v489 = vld [vmem:[%s406 + $0x1d0] sm:$0xff]
      %v490 = vld [vmem:[%s406 + $0x1d8] sm:$0xff]
      %v491 = vld [vmem:[%s406 + $0x1e0] sm:$0xff]
      %v492 = vld [vmem:[%s406 + $0x1e8] sm:$0xff]
      %v493 = vld [vmem:[%s406 + $0x1f0] sm:$0xff]
      %v494 = vld [vmem:[%s406 + $0x1f8] sm:$0xff]
      %v495 = vld [vmem:[%s406 + $0x200] sm:$0xff]
      %v496 = vld [vmem:[%s406 + $0x208] sm:$0xff]
      %v497 = vld [vmem:[%s406 + $0x210] sm:$0xff]
      %v498 = vld [vmem:[%s406 + $0x218] sm:$0xff]
      %v499 = vld [vmem:[%s406 + $0x220] sm:$0xff]
      %v500 = vld [vmem:[%s406 + $0x228] sm:$0xff]
      %v501 = vld [vmem:[%s406 + $0x230] sm:$0xff]
      %v502 = vld [vmem:[%s406 + $0x238] sm:$0xff]
      %v503 = vld [vmem:[%s406 + $0x240] sm:$0xff]
      %v504 = vld [vmem:[%s406 + $0x248] sm:$0xff]
      %v505 = vld [vmem:[%s406 + $0x250] sm:$0xff]
      %v506 = vld [vmem:[%s406 + $0x258] sm:$0xff]
      %v507 = vld [vmem:[%s406 + $0x260] sm:$0xff]
      %v508 = vld [vmem:[%s406 + $0x268] sm:$0xff]
      %v509 = vld [vmem:[%s406 + $0x270] sm:$0xff]
      %v510 = vld [vmem:[%s406 + $0x278] sm:$0xff]
      %v511 = vld [vmem:[%s406 + $0x280] sm:$0xff]
      %v512 = vld [vmem:[%s406 + $0x288] sm:$0xff]
      %v513 = vld [vmem:[%s406 + $0x290] sm:$0xff]
      %v514 = vld [vmem:[%s406 + $0x298] sm:$0xff]
      %v515 = vld [vmem:[%s406 + $0x2a0] sm:$0xff]
      %v516 = vld [vmem:[%s406 + $0x2a8] sm:$0xff]
      %v517 = vld [vmem:[%s406 + $0x2b0] sm:$0xff]
      %v518 = vld [vmem:[%s406 + $0x2b8] sm:$0xff]
      %v519 = vld [vmem:[%s406 + $0x2c0] sm:$0xff]
      %v520 = vld [vmem:[%s406 + $0x2c8] sm:$0xff]
      %v521 = vld [vmem:[%s406 + $0x2d0] sm:$0xff]
      %v522 = vld [vmem:[%s406 + $0x2d8] sm:$0xff]
      %v523 = vld [vmem:[%s406 + $0x2e0] sm:$0xff]
      %v524 = vld [vmem:[%s406 + $0x2e8] sm:$0xff]
      %v525 = vld [vmem:[%s406 + $0x2f0] sm:$0xff]
      %v526 = vld [vmem:[%s406 + $0x2f8] sm:$0xff]
      %v527 = vld [vmem:[%s406 + $0x300] sm:$0xff]
      %v528 = vld [vmem:[%s406 + $0x308] sm:$0xff]
      %v529 = vld [vmem:[%s406 + $0x310] sm:$0xff]
      %v530 = vld [vmem:[%s406 + $0x318] sm:$0xff]
      %v531 = vld [vmem:[%s406 + $0x320] sm:$0xff]
      %v532 = vld [vmem:[%s406 + $0x328] sm:$0xff]
      %v533 = vld [vmem:[%s406 + $0x330] sm:$0xff]
      %v534 = vld [vmem:[%s406 + $0x338] sm:$0xff]
      %v535 = vld [vmem:[%s406 + $0x340] sm:$0xff]
      %v536 = vld [vmem:[%s406 + $0x348] sm:$0xff]
      %v537 = vld [vmem:[%s406 + $0x350] sm:$0xff]
      %v538 = vld [vmem:[%s406 + $0x358] sm:$0xff]
      %v539 = vld [vmem:[%s406 + $0x360] sm:$0xff]
      %v540 = vld [vmem:[%s406 + $0x368] sm:$0xff]
      %v541 = vld [vmem:[%s406 + $0x370] sm:$0xff]
      %v542 = vld [vmem:[%s406 + $0x378] sm:$0xff]
      %v543 = vpack.c.bf16 %v438, %v431
      %v544 = vpack.c.bf16 %v439, %v432
      %v545 = vpack.c.bf16 %v440, %v433
      %v546 = vpack.c.bf16 %v441, %v434
      %v547 = vpack.c.bf16 %v442, %v435
      %v548 = vpack.c.bf16 %v443, %v436
      %v549 = vpack.c.bf16 %v444, %v437
      %v550 = vpack.c.bf16 %v452, %v445
      %v551 = vpack.c.bf16 %v453, %v446
      %v552 = vpack.c.bf16 %v454, %v447
      %v553 = vpack.c.bf16 %v455, %v448
      %v554 = vpack.c.bf16 %v456, %v449
      %v555 = vpack.c.bf16 %v457, %v450
      %v556 = vpack.c.bf16 %v458, %v451
      %v557 = vpack.c.bf16 %v466, %v459
      %v558 = vpack.c.bf16 %v467, %v460
      %v559 = vpack.c.bf16 %v468, %v461
      %v560 = vpack.c.bf16 %v469, %v462
      %v561 = vpack.c.bf16 %v470, %v463
      %v562 = vpack.c.bf16 %v471, %v464
      %v563 = vpack.c.bf16 %v472, %v465
      %v564 = vpack.c.bf16 %v480, %v473
      %v565 = vpack.c.bf16 %v481, %v474
      %v566 = vpack.c.bf16 %v482, %v475
      %v567 = vpack.c.bf16 %v483, %v476
      %v568 = vpack.c.bf16 %v484, %v477
      %v569 = vpack.c.bf16 %v485, %v478
      %v570 = vpack.c.bf16 %v486, %v479
      %v571 = vpack.c.bf16 %v494, %v487
      %v572 = vpack.c.bf16 %v495, %v488
      %v573 = vpack.c.bf16 %v496, %v489
      %v574 = vpack.c.bf16 %v497, %v490
      %v575 = vpack.c.bf16 %v498, %v491
      %v576 = vpack.c.bf16 %v499, %v492
      %v577 = vpack.c.bf16 %v500, %v493
      %v578 = vpack.c.bf16 %v508, %v501
      %v579 = vpack.c.bf16 %v509, %v502
      %v580 = vpack.c.bf16 %v510, %v503
      %v581 = vpack.c.bf16 %v511, %v504
      %v582 = vpack.c.bf16 %v512, %v505
      %v583 = vpack.c.bf16 %v513, %v506
      %v584 = vpack.c.bf16 %v514, %v507
      %v585 = vpack.c.bf16 %v522, %v515
      %v586 = vpack.c.bf16 %v523, %v516
      %v587 = vpack.c.bf16 %v524, %v517
      %v588 = vpack.c.bf16 %v525, %v518
      %v589 = vpack.c.bf16 %v526, %v519
      %v590 = vpack.c.bf16 %v527, %v520
      %v591 = vpack.c.bf16 %v528, %v521
      %v592 = vpack.c.bf16 %v536, %v529
      %v593 = vpack.c.bf16 %v537, %v530
      %v594 = vpack.c.bf16 %v538, %v531
      %v595 = vpack.c.bf16 %v539, %v532
      %v596 = vpack.c.bf16 %v540, %v533
      %v597 = vpack.c.bf16 %v541, %v534
      %v598 = vpack.c.bf16 %v542, %v535
      %v599 = vld [vmem:[%s421] sm:$0xff]
      %v600 = vld [vmem:[%s421 + $0x8] sm:$0xff]
      %v601 = vld [vmem:[%s421 + $0x10] sm:$0xff]
      %v602 = vld [vmem:[%s421 + $0x18] sm:$0xff]
      %v603 = vld [vmem:[%s421 + $0x20] sm:$0xff]
      %v604 = vld [vmem:[%s421 + $0x28] sm:$0xff]
      %v605 = vld [vmem:[%s421 + $0x30] sm:$0xff]
      %v606 = vld [vmem:[%s421 + $0x38] sm:$0xff]
      %v607 = vld [vmem:[%s421 + $0x40] sm:$0xff]
      %v608 = vld [vmem:[%s421 + $0x48] sm:$0xff]
      %v609 = vld [vmem:[%s421 + $0x50] sm:$0xff]
      %v610 = vld [vmem:[%s421 + $0x58] sm:$0xff]
      %v611 = vld [vmem:[%s421 + $0x60] sm:$0xff]
      %v612 = vld [vmem:[%s421 + $0x68] sm:$0xff]
      %v613 = vld [vmem:[%s421 + $0x70] sm:$0xff]
      %v614 = vld [vmem:[%s421 + $0x78] sm:$0xff]
      %v615 = vlaneseq
      %v616 = vand.u32 %v615, 127
      %617 = vset.pattern.permute.xlu0 0
      %618 = vperm.xlu0 %617, %v599
      %v619 = vpop.permute.xlu0 %618
      %620 = vset.pattern.permute.xlu0 0
      %621 = vperm.xlu0 %620, %v600
      %v622 = vpop.permute.xlu0 %621
      %623 = vset.pattern.permute.xlu0 0
      %624 = vperm.xlu0 %623, %v601
      %v625 = vpop.permute.xlu0 %624
      %626 = vset.pattern.permute.xlu0 0
      %627 = vperm.xlu0 %626, %v602
      %v628 = vpop.permute.xlu0 %627
      %629 = vset.pattern.permute.xlu0 0
      %630 = vperm.xlu0 %629, %v603
      %v631 = vpop.permute.xlu0 %630
      %632 = vset.pattern.permute.xlu0 0
      %633 = vperm.xlu0 %632, %v604
      %v634 = vpop.permute.xlu0 %633
      %635 = vset.pattern.permute.xlu0 0
      %636 = vperm.xlu0 %635, %v605
      %v637 = vpop.permute.xlu0 %636
      %638 = vset.pattern.permute.xlu0 0
      %639 = vperm.xlu0 %638, %v606
      %v640 = vpop.permute.xlu0 %639
      %641 = vset.pattern.permute.xlu0 0
      %642 = vperm.xlu0 %641, %v607
      %v643 = vpop.permute.xlu0 %642
      %644 = vset.pattern.permute.xlu0 0
      %645 = vperm.xlu0 %644, %v608
      %v646 = vpop.permute.xlu0 %645
      %647 = vset.pattern.permute.xlu0 0
      %648 = vperm.xlu0 %647, %v609
      %v649 = vpop.permute.xlu0 %648
      %650 = vset.pattern.permute.xlu0 0
      %651 = vperm.xlu0 %650, %v610
      %v652 = vpop.permute.xlu0 %651
      %653 = vset.pattern.permute.xlu0 0
      %654 = vperm.xlu0 %653, %v611
      %v655 = vpop.permute.xlu0 %654
      %656 = vset.pattern.permute.xlu0 0
      %657 = vperm.xlu0 %656, %v612
      %v658 = vpop.permute.xlu0 %657
      %659 = vset.pattern.permute.xlu0 0
      %660 = vperm.xlu0 %659, %v613
      %v661 = vpop.permute.xlu0 %660
      %662 = vset.pattern.permute.xlu0 0
      %663 = vperm.xlu0 %662, %v614
      %v664 = vpop.permute.xlu0 %663
      %vm665 = vcmp.eq.s32.totalorder %v616, %v619
      %vm666 = vcmp.eq.s32.totalorder %v616, %v622
      %vm667 = vcmp.eq.s32.totalorder %v616, %v625
      %vm668 = vcmp.eq.s32.totalorder %v616, %v628
      %vm669 = vcmp.eq.s32.totalorder %v616, %v631
      %vm670 = vcmp.eq.s32.totalorder %v616, %v634
      %vm671 = vcmp.eq.s32.totalorder %v616, %v637
      %vm672 = vcmp.eq.s32.totalorder %v616, %v640
      %vm673 = vcmp.eq.s32.totalorder %v616, %v643
      %vm674 = vcmp.eq.s32.totalorder %v616, %v646
      %vm675 = vcmp.eq.s32.totalorder %v616, %v649
      %vm676 = vcmp.eq.s32.totalorder %v616, %v652
      %vm677 = vcmp.eq.s32.totalorder %v616, %v655
      %vm678 = vcmp.eq.s32.totalorder %v616, %v658
      %vm679 = vcmp.eq.s32.totalorder %v616, %v661
      %vm680 = vcmp.eq.s32.totalorder %v616, %v664
      %v681 = vsel %vm665, 1, 0
      %v682 = vsel %vm666, 1, 0
      %v683 = vsel %vm667, 1, 0
      %v684 = vsel %vm668, 1, 0
      %v685 = vsel %vm669, 1, 0
      %v686 = vsel %vm670, 1, 0
      %v687 = vsel %vm671, 1, 0
      %v688 = vsel %vm672, 1, 0
      %v689 = vsel %vm673, 1, 0
      %v690 = vsel %vm674, 1, 0
      %v691 = vsel %vm675, 1, 0
      %v692 = vsel %vm676, 1, 0
      %v693 = vsel %vm677, 1, 0
      %v694 = vsel %vm678, 1, 0
      %v695 = vsel %vm679, 1, 0
      %v696 = vsel %vm680, 1, 0
      %v697 = vcvt.s32.f32 %v681
      %v698 = vcvt.s32.f32 %v682
      %v699 = vcvt.s32.f32 %v683
      %v700 = vcvt.s32.f32 %v684
      %v701 = vcvt.s32.f32 %v685
      %v702 = vcvt.s32.f32 %v686
      %v703 = vcvt.s32.f32 %v687
      %v704 = vcvt.s32.f32 %v688
      %v705 = vcvt.s32.f32 %v689
      %v706 = vcvt.s32.f32 %v690
      %v707 = vcvt.s32.f32 %v691
      %v708 = vcvt.s32.f32 %v692
      %v709 = vcvt.s32.f32 %v693
      %v710 = vcvt.s32.f32 %v694
      %v711 = vcvt.s32.f32 %v695
      %v712 = vcvt.s32.f32 %v696
      %v713 = vld [vmem:[%s2] sm:$0xff]
      %v714 = vld [vmem:[%s2 + $0x8] sm:$0xff]
      %vm715 = vcmask 130048
      %v717 = vsel %vm715, %v697, 0
      %v720 = vsel %vm715, %v698, 0
      %v723 = vsel %vm715, %v699, 0
      %v726 = vsel %vm715, %v700, 0
      %v729 = vsel %vm715, %v701, 0
      %v732 = vsel %vm715, %v702, 0
      %v735 = vsel %vm715, %v703, 0
      %v738 = vsel %vm715, %v704, 0
      %v741 = vsel %vm715, %v705, 0
      %v744 = vsel %vm715, %v706, 0
      %v747 = vsel %vm715, %v707, 0
      %v750 = vsel %vm715, %v708, 0
      %v753 = vsel %vm715, %v709, 0
      %v756 = vsel %vm715, %v710, 0
      %v759 = vsel %vm715, %v711, 0
      %v762 = vsel %vm715, %v712, 0
      %764 = vmatprep.subr.mxu0 0.0
      %765 = vmatpush1.msra.mxu0 %v713
      %766 = vmatprep.subr.mxu0 0.0
      %767 = vmatpush1.msra.mxu0 %v714
      %768 = vmatprep.subr.mxu0 0.0
      %769 = vmatpush1.msra.mxu0 0.0
      %770 = vmatprep.subr.mxu0 0.0
      %771 = vmatpush1.msra.mxu0 0.0
      %772 = vmatprep.subr.mxu0 0.0
      %773 = vmatpush1.msra.mxu0 0.0
      %774 = vmatprep.subr.mxu0 0.0
      %775 = vmatpush1.msra.mxu0 0.0
      %776 = vmatprep.subr.mxu0 0.0
      %777 = vmatpush1.msra.mxu0 0.0
      %778 = vmatprep.subr.mxu0 0.0
      %779 = vmatpush1.msra.mxu0 0.0
      %780 = vmatprep.subr.mxu0 0.0
      %781 = vmatpush1.msra.mxu0 0.0
      %782 = vmatprep.subr.mxu0 0.0
      %783 = vmatpush1.msra.mxu0 0.0
      %784 = vmatprep.subr.mxu0 0.0
      %785 = vmatpush1.msra.mxu0 0.0
      %786 = vmatprep.subr.mxu0 0.0
      %787 = vmatpush1.msra.mxu0 0.0
      %788 = vmatprep.subr.mxu0 0.0
      %789 = vmatpush1.msra.mxu0 0.0
      %790 = vmatprep.subr.mxu0 0.0
      %791 = vmatpush1.msra.mxu0 0.0
      %792 = vmatprep.subr.mxu0 0.0
      %793 = vmatpush1.msra.mxu0 0.0
      %794 = vmatprep.subr.mxu0 0.0
      %795 = vmatpush1.msra.mxu0 0.0
      %796 = vmatprep.subr.mxu0 0.0
      %797 = vmatpush1.msra.mxu0 0.0
      %798 = vmatprep.subr.mxu0 0.0
      %799 = vmatpush1.msra.mxu0 0.0
      %800 = vmatprep.subr.mxu0 0.0
      %801 = vmatpush1.msra.mxu0 0.0
      %802 = vmatprep.subr.mxu0 0.0
      %803 = vmatpush1.msra.mxu0 0.0
      %804 = vmatprep.subr.mxu0 0.0
      %805 = vmatpush1.msra.mxu0 0.0
      %806 = vmatprep.subr.mxu0 0.0
      %807 = vmatpush1.msra.mxu0 0.0
      %808 = vmatprep.subr.mxu0 0.0
      %809 = vmatpush1.msra.mxu0 0.0
      %810 = vmatprep.subr.mxu0 0.0
      %811 = vmatpush1.msra.mxu0 0.0
      %812 = vmatprep.subr.mxu0 0.0
      %813 = vmatpush1.msra.mxu0 0.0
      %814 = vmatprep.subr.mxu0 0.0
      %815 = vmatpush1.msra.mxu0 0.0
      %816 = vmatprep.subr.mxu0 0.0
      %817 = vmatpush1.msra.mxu0 0.0
      %818 = vmatprep.subr.mxu0 0.0
      %819 = vmatpush1.msra.mxu0 0.0
      %820 = vmatprep.subr.mxu0 0.0
      %821 = vmatpush1.msra.mxu0 0.0
      %822 = vmatprep.subr.mxu0 0.0
      %823 = vmatpush1.msra.mxu0 0.0
      %824 = vmatprep.subr.mxu0 0.0
      %825 = vmatpush1.msra.mxu0 0.0
      %826 = vmatprep.subr.mxu0 0.0
      %827 = vmatpush1.msra.mxu0 0.0
      %828 = vmatprep.mubr.f32.mxu0 0.0
      %829 = vmatmul.mubr.f32.gmra.mrb[0].mxu0 %v717
      %v830 = vpop.f32.mrb[0].mxu0
      %v831 = vadd.f32 0.0, %v830
      %v832 = vpop.f32.mrb[0].mxu0
      %833 = vmatprep.mubr.f32.mxu0 0.0
      %834 = vmatmul.mubr.f32.gmra.mrb[0].mxu0 %v720
      %v835 = vpop.f32.mrb[0].mxu0
      %v836 = vadd.f32 0.0, %v835
      %v837 = vpop.f32.mrb[0].mxu0
      %838 = vmatprep.mubr.f32.mxu0 0.0
      %839 = vmatmul.mubr.f32.gmra.mrb[0].mxu0 %v723
      %v840 = vpop.f32.mrb[0].mxu0
      %v841 = vadd.f32 0.0, %v840
      %v842 = vpop.f32.mrb[0].mxu0
      %843 = vmatprep.mubr.f32.mxu0 0.0
      %844 = vmatmul.mubr.f32.gmra.mrb[0].mxu0 %v726
      %v845 = vpop.f32.mrb[0].mxu0
      %v846 = vadd.f32 0.0, %v845
      %v847 = vpop.f32.mrb[0].mxu0
      %848 = vmatprep.mubr.f32.mxu0 0.0
      %849 = vmatmul.mubr.f32.gmra.mrb[0].mxu0 %v729
      %v850 = vpop.f32.mrb[0].mxu0
      %v851 = vadd.f32 0.0, %v850
      %v852 = vpop.f32.mrb[0].mxu0
      %853 = vmatprep.mubr.f32.mxu0 0.0
      %854 = vmatmul.mubr.f32.gmra.mrb[0].mxu0 %v732
      %v855 = vpop.f32.mrb[0].mxu0
      %v856 = vadd.f32 0.0, %v855
      %v857 = vpop.f32.mrb[0].mxu0
      %858 = vmatprep.mubr.f32.mxu0 0.0
      %859 = vmatmul.mubr.f32.gmra.mrb[0].mxu0 %v735
      %v860 = vpop.f32.mrb[0].mxu0
      %v861 = vadd.f32 0.0, %v860
      %v862 = vpop.f32.mrb[0].mxu0
      %863 = vmatprep.mubr.f32.mxu0 0.0
      %864 = vmatmul.mubr.f32.gmra.mrb[0].mxu0 %v738
      %v865 = vpop.f32.mrb[0].mxu0
      %v866 = vadd.f32 0.0, %v865
      %v867 = vpop.f32.mrb[0].mxu0
      %868 = vmatprep.mubr.f32.mxu0 0.0
      %869 = vmatmul.mubr.f32.gmra.mrb[0].mxu0 %v741
      %v870 = vpop.f32.mrb[0].mxu0
      %v871 = vadd.f32 0.0, %v870
      %v872 = vpop.f32.mrb[0].mxu0
      %873 = vmatprep.mubr.f32.mxu0 0.0
      %874 = vmatmul.mubr.f32.gmra.mrb[0].mxu0 %v744
      %v875 = vpop.f32.mrb[0].mxu0
      %v876 = vadd.f32 0.0, %v875
      %v877 = vpop.f32.mrb[0].mxu0
      %878 = vmatprep.mubr.f32.mxu0 0.0
      %879 = vmatmul.mubr.f32.gmra.mrb[0].mxu0 %v747
      %v880 = vpop.f32.mrb[0].mxu0
      %v881 = vadd.f32 0.0, %v880
      %v882 = vpop.f32.mrb[0].mxu0
      %883 = vmatprep.mubr.f32.mxu0 0.0
      %884 = vmatmul.mubr.f32.gmra.mrb[0].mxu0 %v750
      %v885 = vpop.f32.mrb[0].mxu0
      %v886 = vadd.f32 0.0, %v885
      %v887 = vpop.f32.mrb[0].mxu0
      %888 = vmatprep.mubr.f32.mxu0 0.0
      %889 = vmatmul.mubr.f32.gmra.mrb[0].mxu0 %v753
      %v890 = vpop.f32.mrb[0].mxu0
      %v891 = vadd.f32 0.0, %v890
      %v892 = vpop.f32.mrb[0].mxu0
      %893 = vmatprep.mubr.f32.mxu0 0.0
      %894 = vmatmul.mubr.f32.gmra.mrb[0].mxu0 %v756
      %v895 = vpop.f32.mrb[0].mxu0
      %v896 = vadd.f32 0.0, %v895
      %v897 = vpop.f32.mrb[0].mxu0
      %898 = vmatprep.mubr.f32.mxu0 0.0
      %899 = vmatmul.mubr.f32.gmra.mrb[0].mxu0 %v759
      %v900 = vpop.f32.mrb[0].mxu0
      %v901 = vadd.f32 0.0, %v900
      %v902 = vpop.f32.mrb[0].mxu0
      %903 = vmatprep.mubr.f32.mxu0 0.0
      %904 = vmatmul.mubr.f32.gmra.mrb[0].mxu0 %v762
      %v905 = vpop.f32.mrb[0].mxu0
      %v906 = vadd.f32 0.0, %v905
      %v907 = vpop.f32.mrb[0].mxu0
      %908 = vdwg.mxu0
      %v909 = vld [vmem:[%s3] sm:$0xf]
      %v910 = vld [vmem:[%s3 + $0x4] sm:$0xf]
      %v911 = vld [vmem:[%s3 + $0x8] sm:$0xf]
      %v912 = vld [vmem:[%s3 + $0xc] sm:$0xf]
      %v913 = vld [vmem:[%s3 + $0x10] sm:$0xf]
      %v914 = vld [vmem:[%s3 + $0x14] sm:$0xf]
      %v915 = vld [vmem:[%s3 + $0x18] sm:$0xf]
      %v916 = vld [vmem:[%s3 + $0x1c] sm:$0xf]
      %v917 = vld [vmem:[%s3 + $0x20] sm:$0xf]
      %v918 = vld [vmem:[%s3 + $0x24] sm:$0xf]
      %v919 = vld [vmem:[%s3 + $0x28] sm:$0xf]
      %v920 = vld [vmem:[%s3 + $0x2c] sm:$0xf]
      %v921 = vld [vmem:[%s3 + $0x30] sm:$0xf]
      %v922 = vld [vmem:[%s3 + $0x34] sm:$0xf]
      %v923 = vld [vmem:[%s3 + $0x38] sm:$0xf]
      %v924 = vld [vmem:[%s3 + $0x3c] sm:$0xf]
      %v925 = vld [vmem:[%s3 + $0x40] sm:$0xf]
      %v926 = vld [vmem:[%s3 + $0x44] sm:$0xf]
      %v927 = vld [vmem:[%s3 + $0x48] sm:$0xf]
      %v928 = vld [vmem:[%s3 + $0x4c] sm:$0xf]
      %v929 = vld [vmem:[%s3 + $0x50] sm:$0xf]
      %v930 = vld [vmem:[%s3 + $0x54] sm:$0xf]
      %v931 = vld [vmem:[%s3 + $0x58] sm:$0xf]
      %v932 = vld [vmem:[%s3 + $0x5c] sm:$0xf]
      %v933 = vld [vmem:[%s3 + $0x60] sm:$0xf]
      %v934 = vld [vmem:[%s3 + $0x64] sm:$0xf]
      %v935 = vld [vmem:[%s3 + $0x68] sm:$0xf]
      %v936 = vld [vmem:[%s3 + $0x6c] sm:$0xf]
      %v937 = vld [vmem:[%s3 + $0x70] sm:$0xf]
      %v938 = vld [vmem:[%s3 + $0x74] sm:$0xf]
      %v939 = vld [vmem:[%s3 + $0x78] sm:$0xf]
      %v940 = vld [vmem:[%s3 + $0x7c] sm:$0xf]
      %v941 = vld [vmem:[%s3 + $0x80] sm:$0xf]
      %v942 = vld [vmem:[%s3 + $0x84] sm:$0xf]
      %v943 = vld [vmem:[%s3 + $0x88] sm:$0xf]
      %v944 = vld [vmem:[%s3 + $0x8c] sm:$0xf]
      %v945 = vld [vmem:[%s3 + $0x90] sm:$0xf]
      %v946 = vld [vmem:[%s3 + $0x94] sm:$0xf]
      %v947 = vld [vmem:[%s3 + $0x98] sm:$0xf]
      %v948 = vld [vmem:[%s3 + $0x9c] sm:$0xf]
      %v949 = vld [vmem:[%s3 + $0xa0] sm:$0xf]
      %v950 = vld [vmem:[%s3 + $0xa4] sm:$0xf]
      %v951 = vld [vmem:[%s3 + $0xa8] sm:$0xf]
      %v952 = vld [vmem:[%s3 + $0xac] sm:$0xf]
      %v953 = vld [vmem:[%s3 + $0xb0] sm:$0xf]
      %v954 = vld [vmem:[%s3 + $0xb4] sm:$0xf]
      %v955 = vld [vmem:[%s3 + $0xb8] sm:$0xf]
      %v956 = vld [vmem:[%s3 + $0xbc] sm:$0xf]
      %v957 = vld [vmem:[%s3 + $0xc0] sm:$0xf]
      %v958 = vld [vmem:[%s3 + $0xc4] sm:$0xf]
      %v959 = vld [vmem:[%s3 + $0xc8] sm:$0xf]
      %v960 = vld [vmem:[%s3 + $0xcc] sm:$0xf]
      %v961 = vld [vmem:[%s3 + $0xd0] sm:$0xf]
      %v962 = vld [vmem:[%s3 + $0xd4] sm:$0xf]
      %v963 = vld [vmem:[%s3 + $0xd8] sm:$0xf]
      %v964 = vld [vmem:[%s3 + $0xdc] sm:$0xf]
      %v965 = vld [vmem:[%s3 + $0xe0] sm:$0xf]
      %v966 = vld [vmem:[%s3 + $0xe4] sm:$0xf]
      %v967 = vld [vmem:[%s3 + $0xe8] sm:$0xf]
      %v968 = vld [vmem:[%s3 + $0xec] sm:$0xf]
      %v969 = vld [vmem:[%s3 + $0xf0] sm:$0xf]
      %v970 = vld [vmem:[%s3 + $0xf4] sm:$0xf]
      %v971 = vld [vmem:[%s3 + $0xf8] sm:$0xf]
      %v972 = vld [vmem:[%s3 + $0xfc] sm:$0xf]
      %v973 = vld [vmem:[%s3 + $0x100] sm:$0xf]
      %v974 = vld [vmem:[%s3 + $0x104] sm:$0xf]
      %v975 = vld [vmem:[%s3 + $0x108] sm:$0xf]
      %v976 = vld [vmem:[%s3 + $0x10c] sm:$0xf]
      %v977 = vld [vmem:[%s3 + $0x110] sm:$0xf]
      %v978 = vld [vmem:[%s3 + $0x114] sm:$0xf]
      %v979 = vld [vmem:[%s3 + $0x118] sm:$0xf]
      %v980 = vld [vmem:[%s3 + $0x11c] sm:$0xf]
      %v981 = vld [vmem:[%s3 + $0x120] sm:$0xf]
      %v982 = vld [vmem:[%s3 + $0x124] sm:$0xf]
      %v983 = vld [vmem:[%s3 + $0x128] sm:$0xf]
      %v984 = vld [vmem:[%s3 + $0x12c] sm:$0xf]
      %v985 = vld [vmem:[%s3 + $0x130] sm:$0xf]
      %v986 = vld [vmem:[%s3 + $0x134] sm:$0xf]
      %v987 = vld [vmem:[%s3 + $0x138] sm:$0xf]
      %v988 = vld [vmem:[%s3 + $0x13c] sm:$0xf]
      %v989 = vld [vmem:[%s3 + $0x140] sm:$0xf]
      %v990 = vld [vmem:[%s3 + $0x144] sm:$0xf]
      %v991 = vld [vmem:[%s3 + $0x148] sm:$0xf]
      %v992 = vld [vmem:[%s3 + $0x14c] sm:$0xf]
      %v993 = vld [vmem:[%s3 + $0x150] sm:$0xf]
      %v994 = vld [vmem:[%s3 + $0x154] sm:$0xf]
      %v995 = vld [vmem:[%s3 + $0x158] sm:$0xf]
      %v996 = vld [vmem:[%s3 + $0x15c] sm:$0xf]
      %v997 = vld [vmem:[%s3 + $0x160] sm:$0xf]
      %v998 = vld [vmem:[%s3 + $0x164] sm:$0xf]
      %v999 = vld [vmem:[%s3 + $0x168] sm:$0xf]
      %v1000 = vld [vmem:[%s3 + $0x16c] sm:$0xf]
      %v1001 = vld [vmem:[%s3 + $0x170] sm:$0xf]
      %v1002 = vld [vmem:[%s3 + $0x174] sm:$0xf]
      %v1003 = vld [vmem:[%s3 + $0x178] sm:$0xf]
      %v1004 = vld [vmem:[%s3 + $0x17c] sm:$0xf]
      %v1005 = vld [vmem:[%s3 + $0x180] sm:$0xf]
      %v1006 = vld [vmem:[%s3 + $0x184] sm:$0xf]
      %v1105 = vunpack.c.l.b16 %v909
      %v1106 = vunpack.c.l.b16 %v910
      %v1107 = vunpack.c.l.b16 %v911
      %v1108 = vunpack.c.l.b16 %v912
      %v1109 = vunpack.c.l.b16 %v913
      %v1110 = vunpack.c.l.b16 %v914
      %v1111 = vunpack.c.l.b16 %v915
      %v1112 = vunpack.c.l.b16 %v916
      %v1113 = vunpack.c.l.b16 %v917
      %v1114 = vunpack.c.l.b16 %v918
      %v1115 = vunpack.c.l.b16 %v919
      %v1116 = vunpack.c.l.b16 %v920
      %v1117 = vunpack.c.l.b16 %v921
      %v1118 = vunpack.c.l.b16 %v922
      %v1119 = vunpack.c.l.b16 %v923
      %v1120 = vunpack.c.l.b16 %v924
      %v1121 = vunpack.c.l.b16 %v925
      %v1122 = vunpack.c.l.b16 %v926
      %v1123 = vunpack.c.l.b16 %v927
      %v1124 = vunpack.c.l.b16 %v928
      %v1125 = vunpack.c.l.b16 %v929
      %v1126 = vunpack.c.l.b16 %v930
      %v1127 = vunpack.c.l.b16 %v931
      %v1128 = vunpack.c.l.b16 %v932
      %v1129 = vunpack.c.l.b16 %v933
      %v1130 = vunpack.c.l.b16 %v934
      %v1131 = vunpack.c.l.b16 %v935
      %v1132 = vunpack.c.l.b16 %v936
      %v1133 = vunpack.c.l.b16 %v937
      %v1134 = vunpack.c.l.b16 %v938
      %v1135 = vunpack.c.l.b16 %v939
      %v1136 = vunpack.c.l.b16 %v940
      %v1137 = vunpack.c.l.b16 %v941
      %v1138 = vunpack.c.l.b16 %v942
      %v1139 = vunpack.c.l.b16 %v943
      %v1140 = vunpack.c.l.b16 %v944
      %v1141 = vunpack.c.l.b16 %v945
      %v1142 = vunpack.c.l.b16 %v946
      %v1143 = vunpack.c.l.b16 %v947
      %v1144 = vunpack.c.l.b16 %v948
      %v1145 = vunpack.c.l.b16 %v949
      %v1146 = vunpack.c.l.b16 %v950
      %v1147 = vunpack.c.l.b16 %v951
      %v1148 = vunpack.c.l.b16 %v952
      %v1149 = vunpack.c.l.b16 %v953
      %v1150 = vunpack.c.l.b16 %v954
      %v1151 = vunpack.c.l.b16 %v955
      %v1152 = vunpack.c.l.b16 %v956
      %v1153 = vunpack.c.l.b16 %v957
      %v1154 = vunpack.c.l.b16 %v958
      %v1155 = vunpack.c.l.b16 %v959
      %v1156 = vunpack.c.l.b16 %v960
      %v1157 = vunpack.c.l.b16 %v961
      %v1158 = vunpack.c.l.b16 %v962
      %v1159 = vunpack.c.l.b16 %v963
      %v1160 = vunpack.c.l.b16 %v964
      %v1161 = vunpack.c.l.b16 %v965
      %v1162 = vunpack.c.l.b16 %v966
      %v1163 = vunpack.c.l.b16 %v967
      %v1164 = vunpack.c.l.b16 %v968
      %v1165 = vunpack.c.l.b16 %v969
      %v1166 = vunpack.c.l.b16 %v970
      %v1167 = vunpack.c.l.b16 %v971
      %v1168 = vunpack.c.l.b16 %v972
      %v1169 = vunpack.c.l.b16 %v973
      %v1170 = vunpack.c.l.b16 %v974
      %v1171 = vunpack.c.l.b16 %v975
      %v1172 = vunpack.c.l.b16 %v976
      %v1173 = vunpack.c.l.b16 %v977
      %v1174 = vunpack.c.l.b16 %v978
      %v1175 = vunpack.c.l.b16 %v979
      %v1176 = vunpack.c.l.b16 %v980
      %v1177 = vunpack.c.l.b16 %v981
      %v1178 = vunpack.c.l.b16 %v982
      %v1179 = vunpack.c.l.b16 %v983
      %v1180 = vunpack.c.l.b16 %v984
      %v1181 = vunpack.c.l.b16 %v985
      %v1182 = vunpack.c.l.b16 %v986
      %v1183 = vunpack.c.l.b16 %v987
      %v1184 = vunpack.c.l.b16 %v988
      %v1185 = vunpack.c.l.b16 %v989
      %v1186 = vunpack.c.l.b16 %v990
      %v1187 = vunpack.c.l.b16 %v991
      %v1188 = vunpack.c.l.b16 %v992
      %v1189 = vunpack.c.l.b16 %v993
      %v1190 = vunpack.c.l.b16 %v994
      %v1191 = vunpack.c.l.b16 %v995
      %v1192 = vunpack.c.l.b16 %v996
      %v1193 = vunpack.c.l.b16 %v997
      %v1194 = vunpack.c.l.b16 %v998
      %v1195 = vunpack.c.l.b16 %v999
      %v1196 = vunpack.c.l.b16 %v1000
      %v1197 = vunpack.c.l.b16 %v1001
      %v1198 = vunpack.c.l.b16 %v1002
      %v1199 = vunpack.c.l.b16 %v1003
      %v1200 = vunpack.c.l.b16 %v1004
      %v1201 = vunpack.c.l.b16 %v1005
      %v1202 = vunpack.c.l.b16 %v1006
      %v1203 = vpack.c.b16 %v1106, %v1105
      %v1204 = vpack.c.b16 %v1108, %v1107
      %v1205 = vpack.c.b16 %v1110, %v1109
      %v1206 = vpack.c.b16 %v1112, %v1111
      %v1207 = vpack.c.b16 %v1114, %v1113
      %v1208 = vpack.c.b16 %v1116, %v1115
      %v1209 = vpack.c.b16 %v1118, %v1117
      %v1210 = vpack.c.b16 %v1120, %v1119
      %v1211 = vpack.c.b16 %v1122, %v1121
      %v1212 = vpack.c.b16 %v1124, %v1123
      %v1213 = vpack.c.b16 %v1126, %v1125
      %v1214 = vpack.c.b16 %v1128, %v1127
      %v1215 = vpack.c.b16 %v1130, %v1129
      %v1216 = vpack.c.b16 %v1132, %v1131
      %v1217 = vpack.c.b16 %v1134, %v1133
      %v1218 = vpack.c.b16 %v1136, %v1135
      %v1219 = vpack.c.b16 %v1138, %v1137
      %v1220 = vpack.c.b16 %v1140, %v1139
      %v1221 = vpack.c.b16 %v1142, %v1141
      %v1222 = vpack.c.b16 %v1144, %v1143
      %v1223 = vpack.c.b16 %v1146, %v1145
      %v1224 = vpack.c.b16 %v1148, %v1147
      %v1225 = vpack.c.b16 %v1150, %v1149
      %v1226 = vpack.c.b16 %v1152, %v1151
      %v1227 = vpack.c.b16 %v1154, %v1153
      %v1228 = vpack.c.b16 %v1156, %v1155
      %v1229 = vpack.c.b16 %v1158, %v1157
      %v1230 = vpack.c.b16 %v1160, %v1159
      %v1231 = vpack.c.b16 %v1162, %v1161
      %v1232 = vpack.c.b16 %v1164, %v1163
      %v1233 = vpack.c.b16 %v1166, %v1165
      %v1234 = vpack.c.b16 %v1168, %v1167
      %v1235 = vpack.c.b16 %v1170, %v1169
      %v1236 = vpack.c.b16 %v1172, %v1171
      %v1237 = vpack.c.b16 %v1174, %v1173
      %v1238 = vpack.c.b16 %v1176, %v1175
      %v1239 = vpack.c.b16 %v1178, %v1177
      %v1240 = vpack.c.b16 %v1180, %v1179
      %v1241 = vpack.c.b16 %v1182, %v1181
      %v1242 = vpack.c.b16 %v1184, %v1183
      %v1243 = vpack.c.b16 %v1186, %v1185
      %v1244 = vpack.c.b16 %v1188, %v1187
      %v1245 = vpack.c.b16 %v1190, %v1189
      %v1246 = vpack.c.b16 %v1192, %v1191
      %v1247 = vpack.c.b16 %v1194, %v1193
      %v1248 = vpack.c.b16 %v1196, %v1195
      %v1249 = vpack.c.b16 %v1198, %v1197
      %v1250 = vpack.c.b16 %v1200, %v1199
      %v1251 = vpack.c.b16 %v1202, %v1201
      %v1302 = vsel %vm715, %v549, 0
      %v1305 = vsel %vm715, %v556, 0
      %v1308 = vsel %vm715, %v563, 0
      %v1311 = vsel %vm715, %v570, 0
      %v1314 = vsel %vm715, %v577, 0
      %v1317 = vsel %vm715, %v584, 0
      %v1320 = vsel %vm715, %v591, 0
      %v1323 = vsel %vm715, %v598, 0
      %1325 = vmatprep.subr.bf16.mxu0 0
      %1326 = vmatpush1.bf16.msra.mxu0 %v1203
      %1327 = vmatprep.subr.bf16.mxu0 0
      %1328 = vmatpush1.bf16.msra.mxu0 %v1204
      %1329 = vmatprep.subr.bf16.mxu0 0
      %1330 = vmatpush1.bf16.msra.mxu0 %v1205
      %1331 = vmatprep.subr.bf16.mxu0 0
      %1332 = vmatpush1.bf16.msra.mxu0 %v1206
      %1333 = vmatprep.subr.bf16.mxu0 0
      %1334 = vmatpush1.bf16.msra.mxu0 %v1207
      %1335 = vmatprep.subr.bf16.mxu0 0
      %1336 = vmatpush1.bf16.msra.mxu0 %v1208
      %1337 = vmatprep.subr.bf16.mxu0 0
      %1338 = vmatpush1.bf16.msra.mxu0 %v1209
      %1339 = vmatprep.subr.bf16.mxu0 0
      %1340 = vmatpush1.bf16.msra.mxu0 %v1210
      %1341 = vmatprep.subr.bf16.mxu0 0
      %1342 = vmatpush1.bf16.msra.mxu0 %v1211
      %1343 = vmatprep.subr.bf16.mxu0 0
      %1344 = vmatpush1.bf16.msra.mxu0 %v1212
      %1345 = vmatprep.subr.bf16.mxu0 0
      %1346 = vmatpush1.bf16.msra.mxu0 %v1213
      %1347 = vmatprep.subr.bf16.mxu0 0
      %1348 = vmatpush1.bf16.msra.mxu0 %v1214
      %1349 = vmatprep.subr.bf16.mxu0 0
      %1350 = vmatpush1.bf16.msra.mxu0 %v1215
      %1351 = vmatprep.subr.bf16.mxu0 0
      %1352 = vmatpush1.bf16.msra.mxu0 %v1216
      %1353 = vmatprep.subr.bf16.mxu0 0
      %1354 = vmatpush1.bf16.msra.mxu0 %v1217
      %1355 = vmatprep.subr.bf16.mxu0 0
      %1356 = vmatpush1.bf16.msra.mxu0 %v1218
      %1357 = vmatprep.mubr.bf16.mxu0 %v544
      %1358 = vmatmul.mubr.bf16.gmra.mrb[0].mxu0 %v543
      %v1359 = vpop.f32.mrb[0].mxu0
      %v1360 = vadd.f32 %v831, %v1359
      %v1361 = vpop.f32.mrb[0].mxu0
      %v1362 = vpop.f32.mrb[0].mxu0
      %v1363 = vadd.f32 %v836, %v1362
      %v1364 = vpop.f32.mrb[0].mxu0
      %1365 = vmatprep.mubr.bf16.mxu0 %v551
      %1366 = vmatmul.mubr.bf16.gmra.mrb[0].mxu0 %v550
      %v1367 = vpop.f32.mrb[0].mxu0
      %v1368 = vadd.f32 %v841, %v1367
      %v1369 = vpop.f32.mrb[0].mxu0
      %v1370 = vpop.f32.mrb[0].mxu0
      %v1371 = vadd.f32 %v846, %v1370
      %v1372 = vpop.f32.mrb[0].mxu0
      %1373 = vmatprep.mubr.bf16.mxu0 %v558
      %1374 = vmatmul.mubr.bf16.gmra.mrb[0].mxu0 %v557
      %v1375 = vpop.f32.mrb[0].mxu0
      %v1376 = vadd.f32 %v851, %v1375
      %v1377 = vpop.f32.mrb[0].mxu0
      %v1378 = vpop.f32.mrb[0].mxu0
      %v1379 = vadd.f32 %v856, %v1378
      %v1380 = vpop.f32.mrb[0].mxu0
      %1381 = vmatprep.mubr.bf16.mxu0 %v565
      %1382 = vmatmul.mubr.bf16.gmra.mrb[0].mxu0 %v564
      %v1383 = vpop.f32.mrb[0].mxu0
      %v1384 = vadd.f32 %v861, %v1383
      %v1385 = vpop.f32.mrb[0].mxu0
      %v1386 = vpop.f32.mrb[0].mxu0
      %v1387 = vadd.f32 %v866, %v1386
      %v1388 = vpop.f32.mrb[0].mxu0
      %1389 = vmatprep.mubr.bf16.mxu0 %v572
      %1390 = vmatmul.mubr.bf16.gmra.mrb[0].mxu0 %v571
      %v1391 = vpop.f32.mrb[0].mxu0
      %v1392 = vadd.f32 %v871, %v1391
      %v1393 = vpop.f32.mrb[0].mxu0
      %v1394 = vpop.f32.mrb[0].mxu0
      %v1395 = vadd.f32 %v876, %v1394
      %v1396 = vpop.f32.mrb[0].mxu0
      %1397 = vmatprep.mubr.bf16.mxu0 %v579
      %1398 = vmatmul.mubr.bf16.gmra.mrb[0].mxu0 %v578
      %v1399 = vpop.f32.mrb[0].mxu0
      %v1400 = vadd.f32 %v881, %v1399
      %v1401 = vpop.f32.mrb[0].mxu0
      %v1402 = vpop.f32.mrb[0].mxu0
      %v1403 = vadd.f32 %v886, %v1402
      %v1404 = vpop.f32.mrb[0].mxu0
      %1405 = vmatprep.mubr.bf16.mxu0 %v586
      %1406 = vmatmul.mubr.bf16.gmra.mrb[0].mxu0 %v585
      %v1407 = vpop.f32.mrb[0].mxu0
      %v1408 = vadd.f32 %v891, %v1407
      %v1409 = vpop.f32.mrb[0].mxu0
      %v1410 = vpop.f32.mrb[0].mxu0
      %v1411 = vadd.f32 %v896, %v1410
      %v1412 = vpop.f32.mrb[0].mxu0
      %1413 = vmatprep.mubr.bf16.mxu0 %v593
      %1414 = vmatmul.mubr.bf16.gmra.mrb[0].mxu0 %v592
      %v1415 = vpop.f32.mrb[0].mxu0
      %v1416 = vadd.f32 %v901, %v1415
      %v1417 = vpop.f32.mrb[0].mxu0
      %v1418 = vpop.f32.mrb[0].mxu0
      %v1419 = vadd.f32 %v906, %v1418
      %v1420 = vpop.f32.mrb[0].mxu0
      %1421 = vdwg.mxu0
      %1422 = vmatprep.subr.bf16.mxu0 0
      %1423 = vmatpush1.bf16.msra.mxu0 %v1219
      %1424 = vmatprep.subr.bf16.mxu0 0
      %1425 = vmatpush1.bf16.msra.mxu0 %v1220
      %1426 = vmatprep.subr.bf16.mxu0 0
      %1427 = vmatpush1.bf16.msra.mxu0 %v1221
      %1428 = vmatprep.subr.bf16.mxu0 0
      %1429 = vmatpush1.bf16.msra.mxu0 %v1222
      %1430 = vmatprep.subr.bf16.mxu0 0
      %1431 = vmatpush1.bf16.msra.mxu0 %v1223
      %1432 = vmatprep.subr.bf16.mxu0 0
      %1433 = vmatpush1.bf16.msra.mxu0 %v1224
      %1434 = vmatprep.subr.bf16.mxu0 0
      %1435 = vmatpush1.bf16.msra.mxu0 %v1225
      %1436 = vmatprep.subr.bf16.mxu0 0
      %1437 = vmatpush1.bf16.msra.mxu0 %v1226
      %1438 = vmatprep.subr.bf16.mxu0 0
      %1439 = vmatpush1.bf16.msra.mxu0 %v1227
      %1440 = vmatprep.subr.bf16.mxu0 0
      %1441 = vmatpush1.bf16.msra.mxu0 %v1228
      %1442 = vmatprep.subr.bf16.mxu0 0
      %1443 = vmatpush1.bf16.msra.mxu0 %v1229
      %1444 = vmatprep.subr.bf16.mxu0 0
      %1445 = vmatpush1.bf16.msra.mxu0 %v1230
      %1446 = vmatprep.subr.bf16.mxu0 0
      %1447 = vmatpush1.bf16.msra.mxu0 %v1231
      %1448 = vmatprep.subr.bf16.mxu0 0
      %1449 = vmatpush1.bf16.msra.mxu0 %v1232
      %1450 = vmatprep.subr.bf16.mxu0 0
      %1451 = vmatpush1.bf16.msra.mxu0 %v1233
      %1452 = vmatprep.subr.bf16.mxu0 0
      %1453 = vmatpush1.bf16.msra.mxu0 %v1234
      %1454 = vmatprep.mubr.bf16.mxu0 %v546
      %1455 = vmatmul.mubr.bf16.gmra.mrb[0].mxu0 %v545
      %v1456 = vpop.f32.mrb[0].mxu0
      %v1457 = vadd.f32 %v1360, %v1456
      %v1458 = vpop.f32.mrb[0].mxu0
      %v1459 = vpop.f32.mrb[0].mxu0
      %v1460 = vadd.f32 %v1363, %v1459
      %v1461 = vpop.f32.mrb[0].mxu0
      %1462 = vmatprep.mubr.bf16.mxu0 %v553
      %1463 = vmatmul.mubr.bf16.gmra.mrb[0].mxu0 %v552
      %v1464 = vpop.f32.mrb[0].mxu0
      %v1465 = vadd.f32 %v1368, %v1464
      %v1466 = vpop.f32.mrb[0].mxu0
      %v1467 = vpop.f32.mrb[0].mxu0
      %v1468 = vadd.f32 %v1371, %v1467
      %v1469 = vpop.f32.mrb[0].mxu0
      %1470 = vmatprep.mubr.bf16.mxu0 %v560
      %1471 = vmatmul.mubr.bf16.gmra.mrb[0].mxu0 %v559
      %v1472 = vpop.f32.mrb[0].mxu0
      %v1473 = vadd.f32 %v1376, %v1472
      %v1474 = vpop.f32.mrb[0].mxu0
      %v1475 = vpop.f32.mrb[0].mxu0
      %v1476 = vadd.f32 %v1379, %v1475
      %v1477 = vpop.f32.mrb[0].mxu0
      %1478 = vmatprep.mubr.bf16.mxu0 %v567
      %1479 = vmatmul.mubr.bf16.gmra.mrb[0].mxu0 %v566
      %v1480 = vpop.f32.mrb[0].mxu0
      %v1481 = vadd.f32 %v1384, %v1480
      %v1482 = vpop.f32.mrb[0].mxu0
      %v1483 = vpop.f32.mrb[0].mxu0
      %v1484 = vadd.f32 %v1387, %v1483
      %v1485 = vpop.f32.mrb[0].mxu0
      %1486 = vmatprep.mubr.bf16.mxu0 %v574
      %1487 = vmatmul.mubr.bf16.gmra.mrb[0].mxu0 %v573
      %v1488 = vpop.f32.mrb[0].mxu0
      %v1489 = vadd.f32 %v1392, %v1488
      %v1490 = vpop.f32.mrb[0].mxu0
      %v1491 = vpop.f32.mrb[0].mxu0
      %v1492 = vadd.f32 %v1395, %v1491
      %v1493 = vpop.f32.mrb[0].mxu0
      %1494 = vmatprep.mubr.bf16.mxu0 %v581
      %1495 = vmatmul.mubr.bf16.gmra.mrb[0].mxu0 %v580
      %v1496 = vpop.f32.mrb[0].mxu0
      %v1497 = vadd.f32 %v1400, %v1496
      %v1498 = vpop.f32.mrb[0].mxu0
      %v1499 = vpop.f32.mrb[0].mxu0
      %v1500 = vadd.f32 %v1403, %v1499
      %v1501 = vpop.f32.mrb[0].mxu0
      %1502 = vmatprep.mubr.bf16.mxu0 %v588
      %1503 = vmatmul.mubr.bf16.gmra.mrb[0].mxu0 %v587
      %v1504 = vpop.f32.mrb[0].mxu0
      %v1505 = vadd.f32 %v1408, %v1504
      %v1506 = vpop.f32.mrb[0].mxu0
      %v1507 = vpop.f32.mrb[0].mxu0
      %v1508 = vadd.f32 %v1411, %v1507
      %v1509 = vpop.f32.mrb[0].mxu0
      %1510 = vmatprep.mubr.bf16.mxu0 %v595
      %1511 = vmatmul.mubr.bf16.gmra.mrb[0].mxu0 %v594
      %v1512 = vpop.f32.mrb[0].mxu0
      %v1513 = vadd.f32 %v1416, %v1512
      %v1514 = vpop.f32.mrb[0].mxu0
      %v1515 = vpop.f32.mrb[0].mxu0
      %v1516 = vadd.f32 %v1419, %v1515
      %v1517 = vpop.f32.mrb[0].mxu0
      %1518 = vdwg.mxu0
      %1519 = vmatprep.subr.bf16.mxu0 0
      %1520 = vmatpush1.bf16.msra.mxu0 %v1235
      %1521 = vmatprep.subr.bf16.mxu0 0
      %1522 = vmatpush1.bf16.msra.mxu0 %v1236
      %1523 = vmatprep.subr.bf16.mxu0 0
      %1524 = vmatpush1.bf16.msra.mxu0 %v1237
      %1525 = vmatprep.subr.bf16.mxu0 0
      %1526 = vmatpush1.bf16.msra.mxu0 %v1238
      %1527 = vmatprep.subr.bf16.mxu0 0
      %1528 = vmatpush1.bf16.msra.mxu0 %v1239
      %1529 = vmatprep.subr.bf16.mxu0 0
      %1530 = vmatpush1.bf16.msra.mxu0 %v1240
      %1531 = vmatprep.subr.bf16.mxu0 0
      %1532 = vmatpush1.bf16.msra.mxu0 %v1241
      %1533 = vmatprep.subr.bf16.mxu0 0
      %1534 = vmatpush1.bf16.msra.mxu0 %v1242
      %1535 = vmatprep.subr.bf16.mxu0 0
      %1536 = vmatpush1.bf16.msra.mxu0 %v1243
      %1537 = vmatprep.subr.bf16.mxu0 0
      %1538 = vmatpush1.bf16.msra.mxu0 %v1244
      %1539 = vmatprep.subr.bf16.mxu0 0
      %1540 = vmatpush1.bf16.msra.mxu0 %v1245
      %1541 = vmatprep.subr.bf16.mxu0 0
      %1542 = vmatpush1.bf16.msra.mxu0 %v1246
      %1543 = vmatprep.subr.bf16.mxu0 0
      %1544 = vmatpush1.bf16.msra.mxu0 %v1247
      %1545 = vmatprep.subr.bf16.mxu0 0
      %1546 = vmatpush1.bf16.msra.mxu0 %v1248
      %1547 = vmatprep.subr.bf16.mxu0 0
      %1548 = vmatpush1.bf16.msra.mxu0 %v1249
      %1549 = vmatprep.subr.bf16.mxu0 0
      %1550 = vmatpush1.bf16.msra.mxu0 %v1250
      %1551 = vmatprep.mubr.bf16.mxu0 %v548
      %1552 = vmatmul.mubr.bf16.gmra.mrb[0].mxu0 %v547
      %v1553 = vpop.f32.mrb[0].mxu0
      %v1554 = vadd.f32 %v1457, %v1553
      %v1555 = vpop.f32.mrb[0].mxu0
      %v1556 = vpop.f32.mrb[0].mxu0
      %v1557 = vadd.f32 %v1460, %v1556
      %v1558 = vpop.f32.mrb[0].mxu0
      %1559 = vmatprep.mubr.bf16.mxu0 %v555
      %1560 = vmatmul.mubr.bf16.gmra.mrb[0].mxu0 %v554
      %v1561 = vpop.f32.mrb[0].mxu0
      %v1562 = vadd.f32 %v1465, %v1561
      %v1563 = vpop.f32.mrb[0].mxu0
      %v1564 = vpop.f32.mrb[0].mxu0
      %v1565 = vadd.f32 %v1468, %v1564
      %v1566 = vpop.f32.mrb[0].mxu0
      %1567 = vmatprep.mubr.bf16.mxu0 %v562
      %1568 = vmatmul.mubr.bf16.gmra.mrb[0].mxu0 %v561
      %v1569 = vpop.f32.mrb[0].mxu0
      %v1570 = vadd.f32 %v1473, %v1569
      %v1571 = vpop.f32.mrb[0].mxu0
      %v1572 = vpop.f32.mrb[0].mxu0
      %v1573 = vadd.f32 %v1476, %v1572
      %v1574 = vpop.f32.mrb[0].mxu0
      %1575 = vmatprep.mubr.bf16.mxu0 %v569
      %1576 = vmatmul.mubr.bf16.gmra.mrb[0].mxu0 %v568
      %v1577 = vpop.f32.mrb[0].mxu0
      %v1578 = vadd.f32 %v1481, %v1577
      %v1579 = vpop.f32.mrb[0].mxu0
      %v1580 = vpop.f32.mrb[0].mxu0
      %v1581 = vadd.f32 %v1484, %v1580
      %v1582 = vpop.f32.mrb[0].mxu0
      %1583 = vmatprep.mubr.bf16.mxu0 %v576
      %1584 = vmatmul.mubr.bf16.gmra.mrb[0].mxu0 %v575
      %v1585 = vpop.f32.mrb[0].mxu0
      %v1586 = vadd.f32 %v1489, %v1585
      %v1587 = vpop.f32.mrb[0].mxu0
      %v1588 = vpop.f32.mrb[0].mxu0
      %v1589 = vadd.f32 %v1492, %v1588
      %v1590 = vpop.f32.mrb[0].mxu0
      %1591 = vmatprep.mubr.bf16.mxu0 %v583
      %1592 = vmatmul.mubr.bf16.gmra.mrb[0].mxu0 %v582
      %v1593 = vpop.f32.mrb[0].mxu0
      %v1594 = vadd.f32 %v1497, %v1593
      %v1595 = vpop.f32.mrb[0].mxu0
      %v1596 = vpop.f32.mrb[0].mxu0
      %v1597 = vadd.f32 %v1500, %v1596
      %v1598 = vpop.f32.mrb[0].mxu0
      %1599 = vmatprep.mubr.bf16.mxu0 %v590
      %1600 = vmatmul.mubr.bf16.gmra.mrb[0].mxu0 %v589
      %v1601 = vpop.f32.mrb[0].mxu0
      %v1602 = vadd.f32 %v1505, %v1601
      %v1603 = vpop.f32.mrb[0].mxu0
      %v1604 = vpop.f32.mrb[0].mxu0
      %v1605 = vadd.f32 %v1508, %v1604
      %v1606 = vpop.f32.mrb[0].mxu0
      %1607 = vmatprep.mubr.bf16.mxu0 %v597
      %1608 = vmatmul.mubr.bf16.gmra.mrb[0].mxu0 %v596
      %v1609 = vpop.f32.mrb[0].mxu0
      %v1610 = vadd.f32 %v1513, %v1609
      %v1611 = vpop.f32.mrb[0].mxu0
      %v1612 = vpop.f32.mrb[0].mxu0
      %v1613 = vadd.f32 %v1516, %v1612
      %v1614 = vpop.f32.mrb[0].mxu0
      %1615 = vdwg.mxu0
      %1616 = vmatprep.subr.bf16.mxu0 0
      %1617 = vmatpush1.bf16.msra.mxu0 %v1251
      %1618 = vmatprep.subr.bf16.mxu0 0
      %1619 = vmatpush1.bf16.msra.mxu0 0
      %1620 = vmatprep.subr.bf16.mxu0 0
      %1621 = vmatpush1.bf16.msra.mxu0 0
      %1622 = vmatprep.subr.bf16.mxu0 0
      %1623 = vmatpush1.bf16.msra.mxu0 0
      %1624 = vmatprep.subr.bf16.mxu0 0
      %1625 = vmatpush1.bf16.msra.mxu0 0
      %1626 = vmatprep.subr.bf16.mxu0 0
      %1627 = vmatpush1.bf16.msra.mxu0 0
      %1628 = vmatprep.subr.bf16.mxu0 0
      %1629 = vmatpush1.bf16.msra.mxu0 0
      %1630 = vmatprep.subr.bf16.mxu0 0
      %1631 = vmatpush1.bf16.msra.mxu0 0
      %1632 = vmatprep.subr.bf16.mxu0 0
      %1633 = vmatpush1.bf16.msra.mxu0 0
      %1634 = vmatprep.subr.bf16.mxu0 0
      %1635 = vmatpush1.bf16.msra.mxu0 0
      %1636 = vmatprep.subr.bf16.mxu0 0
      %1637 = vmatpush1.bf16.msra.mxu0 0
      %1638 = vmatprep.subr.bf16.mxu0 0
      %1639 = vmatpush1.bf16.msra.mxu0 0
      %1640 = vmatprep.subr.bf16.mxu0 0
      %1641 = vmatpush1.bf16.msra.mxu0 0
      %1642 = vmatprep.subr.bf16.mxu0 0
      %1643 = vmatpush1.bf16.msra.mxu0 0
      %1644 = vmatprep.subr.bf16.mxu0 0
      %1645 = vmatpush1.bf16.msra.mxu0 0
      %1646 = vmatprep.subr.bf16.mxu0 0
      %1647 = vmatpush1.bf16.msra.mxu0 0
      %1648 = vmatprep.mubr.bf16.mxu0 0
      %1649 = vmatmul.mubr.bf16.gmra.mrb[0].mxu0 %v1302
      %v1650 = vpop.f32.mrb[0].mxu0
      %v1651 = vadd.f32 %v1554, %v1650
      %v1652 = vpop.f32.mrb[0].mxu0
      %v1653 = vpop.f32.mrb[0].mxu0
      %v1654 = vadd.f32 %v1557, %v1653
      %v1655 = vpop.f32.mrb[0].mxu0
      %1656 = vmatprep.mubr.bf16.mxu0 0
      %1657 = vmatmul.mubr.bf16.gmra.mrb[0].mxu0 %v1305
      %v1658 = vpop.f32.mrb[0].mxu0
      %v1659 = vadd.f32 %v1562, %v1658
      %v1660 = vpop.f32.mrb[0].mxu0
      %v1661 = vpop.f32.mrb[0].mxu0
      %v1662 = vadd.f32 %v1565, %v1661
      %v1663 = vpop.f32.mrb[0].mxu0
      %1664 = vmatprep.mubr.bf16.mxu0 0
      %1665 = vmatmul.mubr.bf16.gmra.mrb[0].mxu0 %v1308
      %v1666 = vpop.f32.mrb[0].mxu0
      %v1667 = vadd.f32 %v1570, %v1666
      %v1668 = vpop.f32.mrb[0].mxu0
      %v1669 = vpop.f32.mrb[0].mxu0
      %v1670 = vadd.f32 %v1573, %v1669
      %v1671 = vpop.f32.mrb[0].mxu0
      %1672 = vmatprep.mubr.bf16.mxu0 0
      %1673 = vmatmul.mubr.bf16.gmra.mrb[0].mxu0 %v1311
      %v1674 = vpop.f32.mrb[0].mxu0
      %v1675 = vadd.f32 %v1578, %v1674
      %v1676 = vpop.f32.mrb[0].mxu0
      %v1677 = vpop.f32.mrb[0].mxu0
      %v1678 = vadd.f32 %v1581, %v1677
      %v1679 = vpop.f32.mrb[0].mxu0
      %1680 = vmatprep.mubr.bf16.mxu0 0
      %1681 = vmatmul.mubr.bf16.gmra.mrb[0].mxu0 %v1314
      %v1682 = vpop.f32.mrb[0].mxu0
      %v1683 = vadd.f32 %v1586, %v1682
      %v1684 = vpop.f32.mrb[0].mxu0
      %v1685 = vpop.f32.mrb[0].mxu0
      %v1686 = vadd.f32 %v1589, %v1685
      %v1687 = vpop.f32.mrb[0].mxu0
      %1688 = vmatprep.mubr.bf16.mxu0 0
      %1689 = vmatmul.mubr.bf16.gmra.mrb[0].mxu0 %v1317
      %v1690 = vpop.f32.mrb[0].mxu0
      %v1691 = vadd.f32 %v1594, %v1690
      %v1692 = vpop.f32.mrb[0].mxu0
      %v1693 = vpop.f32.mrb[0].mxu0
      %v1694 = vadd.f32 %v1597, %v1693
      %v1695 = vpop.f32.mrb[0].mxu0
      %1696 = vmatprep.mubr.bf16.mxu0 0
      %1697 = vmatmul.mubr.bf16.gmra.mrb[0].mxu0 %v1320
      %v1698 = vpop.f32.mrb[0].mxu0
      %v1699 = vadd.f32 %v1602, %v1698
      %v1700 = vpop.f32.mrb[0].mxu0
      %v1701 = vpop.f32.mrb[0].mxu0
      %v1702 = vadd.f32 %v1605, %v1701
      %v1703 = vpop.f32.mrb[0].mxu0
      %1704 = vmatprep.mubr.bf16.mxu0 0
      %1705 = vmatmul.mubr.bf16.gmra.mrb[0].mxu0 %v1323
      %v1706 = vpop.f32.mrb[0].mxu0
      %v1707 = vadd.f32 %v1610, %v1706
      %v1708 = vpop.f32.mrb[0].mxu0
      %v1709 = vpop.f32.mrb[0].mxu0
      %v1710 = vadd.f32 %v1613, %v1709
      %v1711 = vpop.f32.mrb[0].mxu0
      %1712 = vdwg.mxu0
      %vm1713 = vcmp.gt.f32.partialorder %v1651, 0.0
      %vm1714 = vcmp.gt.f32.partialorder %v1654, 0.0
      %vm1715 = vcmp.gt.f32.partialorder %v1659, 0.0
      %vm1716 = vcmp.gt.f32.partialorder %v1662, 0.0
      %vm1717 = vcmp.gt.f32.partialorder %v1667, 0.0
      %vm1718 = vcmp.gt.f32.partialorder %v1670, 0.0
      %vm1719 = vcmp.gt.f32.partialorder %v1675, 0.0
      %vm1720 = vcmp.gt.f32.partialorder %v1678, 0.0
      %vm1721 = vcmp.gt.f32.partialorder %v1683, 0.0
      %vm1722 = vcmp.gt.f32.partialorder %v1686, 0.0
      %vm1723 = vcmp.gt.f32.partialorder %v1691, 0.0
      %vm1724 = vcmp.gt.f32.partialorder %v1694, 0.0
      %vm1725 = vcmp.gt.f32.partialorder %v1699, 0.0
      %vm1726 = vcmp.gt.f32.partialorder %v1702, 0.0
      %vm1727 = vcmp.gt.f32.partialorder %v1707, 0.0
      %vm1728 = vcmp.gt.f32.partialorder %v1710, 0.0
      %v1729 = vmul.f32 %v1651, 0.3
      %v1730 = vmul.f32 %v1654, 0.3
      %v1731 = vmul.f32 %v1659, 0.3
      %v1732 = vmul.f32 %v1662, 0.3
      %v1733 = vmul.f32 %v1667, 0.3
      %v1734 = vmul.f32 %v1670, 0.3
      %v1735 = vmul.f32 %v1675, 0.3
      %v1736 = vmul.f32 %v1678, 0.3
      %v1737 = vmul.f32 %v1683, 0.3
      %v1738 = vmul.f32 %v1686, 0.3
      %v1739 = vmul.f32 %v1691, 0.3
      %v1740 = vmul.f32 %v1694, 0.3
      %v1741 = vmul.f32 %v1699, 0.3
      %v1742 = vmul.f32 %v1702, 0.3
      %v1743 = vmul.f32 %v1707, 0.3
      %v1744 = vmul.f32 %v1710, 0.3
      %v1745 = vsel %vm1713, %v1651, %v1729
      %v1746 = vsel %vm1714, %v1654, %v1730
      %v1747 = vsel %vm1715, %v1659, %v1731
      %v1748 = vsel %vm1716, %v1662, %v1732
      %v1749 = vsel %vm1717, %v1667, %v1733
      %v1750 = vsel %vm1718, %v1670, %v1734
      %v1751 = vsel %vm1719, %v1675, %v1735
      %v1752 = vsel %vm1720, %v1678, %v1736
      %v1753 = vsel %vm1721, %v1683, %v1737
      %v1754 = vsel %vm1722, %v1686, %v1738
      %v1755 = vsel %vm1723, %v1691, %v1739
      %v1756 = vsel %vm1724, %v1694, %v1740
      %v1757 = vsel %vm1725, %v1699, %v1741
      %v1758 = vsel %vm1726, %v1702, %v1742
      %v1759 = vsel %vm1727, %v1707, %v1743
      %v1760 = vsel %vm1728, %v1710, %v1744
      %v1761 = vpack.c.bf16 %v1746, %v1745
      %v1762 = vpack.c.bf16 %v1748, %v1747
      %v1763 = vpack.c.bf16 %v1750, %v1749
      %v1764 = vpack.c.bf16 %v1752, %v1751
      %v1765 = vpack.c.bf16 %v1754, %v1753
      %v1766 = vpack.c.bf16 %v1756, %v1755
      %v1767 = vpack.c.bf16 %v1758, %v1757
      %v1768 = vpack.c.bf16 %v1760, %v1759
      %v1769 = vld [vmem:[%s4] sm:$0xf]
      %v1770 = vld [vmem:[%s4 + $0x4] sm:$0xf]
      %v1771 = vld [vmem:[%s4 + $0x8] sm:$0xf]
      %v1772 = vld [vmem:[%s4 + $0xc] sm:$0xf]
      %v1773 = vld [vmem:[%s4 + $0x10] sm:$0xf]
      %v1774 = vld [vmem:[%s4 + $0x14] sm:$0xf]
      %v1775 = vld [vmem:[%s4 + $0x18] sm:$0xf]
      %v1776 = vld [vmem:[%s4 + $0x1c] sm:$0xf]
      %v1777 = vld [vmem:[%s4 + $0x20] sm:$0xf]
      %v1778 = vld [vmem:[%s4 + $0x24] sm:$0xf]
      %v1779 = vld [vmem:[%s4 + $0x28] sm:$0xf]
      %v1780 = vld [vmem:[%s4 + $0x2c] sm:$0xf]
      %v1781 = vld [vmem:[%s4 + $0x30] sm:$0xf]
      %v1782 = vld [vmem:[%s4 + $0x34] sm:$0xf]
      %v1783 = vld [vmem:[%s4 + $0x38] sm:$0xf]
      %v1784 = vld [vmem:[%s4 + $0x3c] sm:$0xf]
      %v1785 = vld [vmem:[%s5] sm:$0x1]
      %v1787 = vlaneseq
      %v1788 = vshrl.u32 %v1787, 7
      %v1789 = vsub.s32 0, %v1788
      %v1790 = vrot.slane %v1785, %v1789
      %v1808 = vunpack.c.l.b16 %v1769
      %v1809 = vunpack.c.l.b16 %v1770
      %v1810 = vunpack.c.l.b16 %v1771
      %v1811 = vunpack.c.l.b16 %v1772
      %v1812 = vunpack.c.l.b16 %v1773
      %v1813 = vunpack.c.l.b16 %v1774
      %v1814 = vunpack.c.l.b16 %v1775
      %v1815 = vunpack.c.l.b16 %v1776
      %v1816 = vunpack.c.l.b16 %v1777
      %v1817 = vunpack.c.l.b16 %v1778
      %v1818 = vunpack.c.l.b16 %v1779
      %v1819 = vunpack.c.l.b16 %v1780
      %v1820 = vunpack.c.l.b16 %v1781
      %v1821 = vunpack.c.l.b16 %v1782
      %v1822 = vunpack.c.l.b16 %v1783
      %v1823 = vunpack.c.l.b16 %v1784
      %v1824 = vpack.c.b16 %v1809, %v1808
      %v1825 = vpack.c.b16 %v1811, %v1810
      %v1826 = vpack.c.b16 %v1813, %v1812
      %v1827 = vpack.c.b16 %v1815, %v1814
      %v1828 = vpack.c.b16 %v1817, %v1816
      %v1829 = vpack.c.b16 %v1819, %v1818
      %v1830 = vpack.c.b16 %v1821, %v1820
      %v1831 = vpack.c.b16 %v1823, %v1822
      %1840 = vmatprep.subr.bf16.mxu0 0
      %1841 = vmatpush1.bf16.msra.mxu0 %v1824
      %1842 = vmatprep.subr.bf16.mxu0 0
      %1843 = vmatpush1.bf16.msra.mxu0 %v1825
      %1844 = vmatprep.subr.bf16.mxu0 0
      %1845 = vmatpush1.bf16.msra.mxu0 %v1826
      %1846 = vmatprep.subr.bf16.mxu0 0
      %1847 = vmatpush1.bf16.msra.mxu0 %v1827
      %1848 = vmatprep.subr.bf16.mxu0 0
      %1849 = vmatpush1.bf16.msra.mxu0 %v1828
      %1850 = vmatprep.subr.bf16.mxu0 0
      %1851 = vmatpush1.bf16.msra.mxu0 %v1829
      %1852 = vmatprep.subr.bf16.mxu0 0
      %1853 = vmatpush1.bf16.msra.mxu0 %v1830
      %1854 = vmatprep.subr.bf16.mxu0 0
      %1855 = vmatpush1.bf16.msra.mxu0 %v1831
      %1856 = vmatprep.subr.bf16.mxu0 0
      %1857 = vmatpush1.bf16.msra.mxu0 0
      %1858 = vmatprep.subr.bf16.mxu0 0
      %1859 = vmatpush1.bf16.msra.mxu0 0
      %1860 = vmatprep.subr.bf16.mxu0 0
      %1861 = vmatpush1.bf16.msra.mxu0 0
      %1862 = vmatprep.subr.bf16.mxu0 0
      %1863 = vmatpush1.bf16.msra.mxu0 0
      %1864 = vmatprep.subr.bf16.mxu0 0
      %1865 = vmatpush1.bf16.msra.mxu0 0
      %1866 = vmatprep.subr.bf16.mxu0 0
      %1867 = vmatpush1.bf16.msra.mxu0 0
      %1868 = vmatprep.subr.bf16.mxu0 0
      %1869 = vmatpush1.bf16.msra.mxu0 0
      %1870 = vmatprep.subr.bf16.mxu0 0
      %1871 = vmatpush1.bf16.msra.mxu0 0
      %1872 = vmatprep.mubr.bf16.mxu0 0
      %1873 = vmatmul.mubr.bf16.gmra.mrb[0].mxu0 %v1761
      %v1874 = vpop.f32.mrb[0].mxu0
      %v1875 = vadd.f32 %v1790, %v1874
      %v1876 = vpop.f32.mrb[0].mxu0
      %v1877 = vpop.f32.mrb[0].mxu0
      %v1878 = vadd.f32 %v1790, %v1877
      %v1879 = vpop.f32.mrb[0].mxu0
      %1880 = vmatprep.mubr.bf16.mxu0 0
      %1881 = vmatmul.mubr.bf16.gmra.mrb[0].mxu0 %v1762
      %v1882 = vpop.f32.mrb[0].mxu0
      %v1883 = vadd.f32 %v1790, %v1882
      %v1884 = vpop.f32.mrb[0].mxu0
      %v1885 = vpop.f32.mrb[0].mxu0
      %v1886 = vadd.f32 %v1790, %v1885
      %v1887 = vpop.f32.mrb[0].mxu0
      %1888 = vmatprep.mubr.bf16.mxu0 0
      %1889 = vmatmul.mubr.bf16.gmra.mrb[0].mxu0 %v1763
      %v1890 = vpop.f32.mrb[0].mxu0
      %v1891 = vadd.f32 %v1790, %v1890
      %v1892 = vpop.f32.mrb[0].mxu0
      %v1893 = vpop.f32.mrb[0].mxu0
      %v1894 = vadd.f32 %v1790, %v1893
      %v1895 = vpop.f32.mrb[0].mxu0
      %1896 = vmatprep.mubr.bf16.mxu0 0
      %1897 = vmatmul.mubr.bf16.gmra.mrb[0].mxu0 %v1764
      %v1898 = vpop.f32.mrb[0].mxu0
      %v1899 = vadd.f32 %v1790, %v1898
      %v1900 = vpop.f32.mrb[0].mxu0
      %v1901 = vpop.f32.mrb[0].mxu0
      %v1902 = vadd.f32 %v1790, %v1901
      %v1903 = vpop.f32.mrb[0].mxu0
      %1904 = vmatprep.mubr.bf16.mxu0 0
      %1905 = vmatmul.mubr.bf16.gmra.mrb[0].mxu0 %v1765
      %v1906 = vpop.f32.mrb[0].mxu0
      %v1907 = vadd.f32 %v1790, %v1906
      %v1908 = vpop.f32.mrb[0].mxu0
      %v1909 = vpop.f32.mrb[0].mxu0
      %v1910 = vadd.f32 %v1790, %v1909
      %v1911 = vpop.f32.mrb[0].mxu0
      %1912 = vmatprep.mubr.bf16.mxu0 0
      %1913 = vmatmul.mubr.bf16.gmra.mrb[0].mxu0 %v1766
      %v1914 = vpop.f32.mrb[0].mxu0
      %v1915 = vadd.f32 %v1790, %v1914
      %v1916 = vpop.f32.mrb[0].mxu0
      %v1917 = vpop.f32.mrb[0].mxu0
      %v1918 = vadd.f32 %v1790, %v1917
      %v1919 = vpop.f32.mrb[0].mxu0
      %1920 = vmatprep.mubr.bf16.mxu0 0
      %1921 = vmatmul.mubr.bf16.gmra.mrb[0].mxu0 %v1767
      %v1922 = vpop.f32.mrb[0].mxu0
      %v1923 = vadd.f32 %v1790, %v1922
      %v1924 = vpop.f32.mrb[0].mxu0
      %v1925 = vpop.f32.mrb[0].mxu0
      %v1926 = vadd.f32 %v1790, %v1925
      %v1927 = vpop.f32.mrb[0].mxu0
      %1928 = vmatprep.mubr.bf16.mxu0 0
      %1929 = vmatmul.mubr.bf16.gmra.mrb[0].mxu0 %v1768
      %v1930 = vpop.f32.mrb[0].mxu0
      %v1931 = vadd.f32 %v1790, %v1930
      %v1932 = vpop.f32.mrb[0].mxu0
      %v1933 = vpop.f32.mrb[0].mxu0
      %v1934 = vadd.f32 %v1790, %v1933
      %v1935 = vpop.f32.mrb[0].mxu0
      %1936 = vdwg.mxu0
      %vm1937 = vcmp.gt.f32.partialorder %v1875, 0.0
      %vm1938 = vcmp.gt.f32.partialorder %v1878, 0.0
      %vm1939 = vcmp.gt.f32.partialorder %v1883, 0.0
      %vm1940 = vcmp.gt.f32.partialorder %v1886, 0.0
      %vm1941 = vcmp.gt.f32.partialorder %v1891, 0.0
      %vm1942 = vcmp.gt.f32.partialorder %v1894, 0.0
      %vm1943 = vcmp.gt.f32.partialorder %v1899, 0.0
      %vm1944 = vcmp.gt.f32.partialorder %v1902, 0.0
      %vm1945 = vcmp.gt.f32.partialorder %v1907, 0.0
      %vm1946 = vcmp.gt.f32.partialorder %v1910, 0.0
      %vm1947 = vcmp.gt.f32.partialorder %v1915, 0.0
      %vm1948 = vcmp.gt.f32.partialorder %v1918, 0.0
      %vm1949 = vcmp.gt.f32.partialorder %v1923, 0.0
      %vm1950 = vcmp.gt.f32.partialorder %v1926, 0.0
      %vm1951 = vcmp.gt.f32.partialorder %v1931, 0.0
      %vm1952 = vcmp.gt.f32.partialorder %v1934, 0.0
      %v1953 = vmul.f32 %v1875, 0.3
      %v1954 = vmul.f32 %v1878, 0.3
      %v1955 = vmul.f32 %v1883, 0.3
      %v1956 = vmul.f32 %v1886, 0.3
      %v1957 = vmul.f32 %v1891, 0.3
      %v1958 = vmul.f32 %v1894, 0.3
      %v1959 = vmul.f32 %v1899, 0.3
      %v1960 = vmul.f32 %v1902, 0.3
      %v1961 = vmul.f32 %v1907, 0.3
      %v1962 = vmul.f32 %v1910, 0.3
      %v1963 = vmul.f32 %v1915, 0.3
      %v1964 = vmul.f32 %v1918, 0.3
      %v1965 = vmul.f32 %v1923, 0.3
      %v1966 = vmul.f32 %v1926, 0.3
      %v1967 = vmul.f32 %v1931, 0.3
      %v1968 = vmul.f32 %v1934, 0.3
      %v1969 = vsel %vm1937, %v1875, %v1953
      %v1970 = vsel %vm1938, %v1878, %v1954
      %v1971 = vsel %vm1939, %v1883, %v1955
      %v1972 = vsel %vm1940, %v1886, %v1956
      %v1973 = vsel %vm1941, %v1891, %v1957
      %v1974 = vsel %vm1942, %v1894, %v1958
      %v1975 = vsel %vm1943, %v1899, %v1959
      %v1976 = vsel %vm1944, %v1902, %v1960
      %v1977 = vsel %vm1945, %v1907, %v1961
      %v1978 = vsel %vm1946, %v1910, %v1962
      %v1979 = vsel %vm1947, %v1915, %v1963
      %v1980 = vsel %vm1948, %v1918, %v1964
      %v1981 = vsel %vm1949, %v1923, %v1965
      %v1982 = vsel %vm1950, %v1926, %v1966
      %v1983 = vsel %vm1951, %v1931, %v1967
      %v1984 = vsel %vm1952, %v1934, %v1968
      %v1985 = vpack.c.bf16 %v1970, %v1969
      %v1986 = vpack.c.bf16 %v1972, %v1971
      %v1987 = vpack.c.bf16 %v1974, %v1973
      %v1988 = vpack.c.bf16 %v1976, %v1975
      %v1989 = vpack.c.bf16 %v1978, %v1977
      %v1990 = vpack.c.bf16 %v1980, %v1979
      %v1991 = vpack.c.bf16 %v1982, %v1981
      %v1992 = vpack.c.bf16 %v1984, %v1983
      %v1993 = vld [vmem:[%s6] sm:$0xf]
      %v1994 = vld [vmem:[%s6 + $0x4] sm:$0xf]
      %v1995 = vld [vmem:[%s6 + $0x8] sm:$0xf]
      %v1996 = vld [vmem:[%s6 + $0xc] sm:$0xf]
      %v1997 = vld [vmem:[%s6 + $0x10] sm:$0xf]
      %v1998 = vld [vmem:[%s6 + $0x14] sm:$0xf]
      %v1999 = vld [vmem:[%s6 + $0x18] sm:$0xf]
      %v2000 = vld [vmem:[%s6 + $0x1c] sm:$0xf]
      %v2001 = vld [vmem:[%s6 + $0x20] sm:$0xf]
      %v2002 = vld [vmem:[%s6 + $0x24] sm:$0xf]
      %v2003 = vld [vmem:[%s6 + $0x28] sm:$0xf]
      %v2004 = vld [vmem:[%s6 + $0x2c] sm:$0xf]
      %v2005 = vld [vmem:[%s6 + $0x30] sm:$0xf]
      %v2006 = vld [vmem:[%s6 + $0x34] sm:$0xf]
      %v2007 = vld [vmem:[%s6 + $0x38] sm:$0xf]
      %v2008 = vld [vmem:[%s6 + $0x3c] sm:$0xf]
      %v2009 = vld [vmem:[%s7] sm:$0x1]
      %v2011 = vlaneseq
      %v2012 = vshrl.u32 %v2011, 7
      %v2013 = vsub.s32 0, %v2012
      %v2014 = vrot.slane %v2009, %v2013
      %v2032 = vunpack.c.l.b16 %v1993
      %v2033 = vunpack.c.l.b16 %v1994
      %v2034 = vunpack.c.l.b16 %v1995
      %v2035 = vunpack.c.l.b16 %v1996
      %v2036 = vunpack.c.l.b16 %v1997
      %v2037 = vunpack.c.l.b16 %v1998
      %v2038 = vunpack.c.l.b16 %v1999
      %v2039 = vunpack.c.l.b16 %v2000
      %v2040 = vunpack.c.l.b16 %v2001
      %v2041 = vunpack.c.l.b16 %v2002
      %v2042 = vunpack.c.l.b16 %v2003
      %v2043 = vunpack.c.l.b16 %v2004
      %v2044 = vunpack.c.l.b16 %v2005
      %v2045 = vunpack.c.l.b16 %v2006
      %v2046 = vunpack.c.l.b16 %v2007
      %v2047 = vunpack.c.l.b16 %v2008
      %v2048 = vpack.c.b16 %v2033, %v2032
      %v2049 = vpack.c.b16 %v2035, %v2034
      %v2050 = vpack.c.b16 %v2037, %v2036
      %v2051 = vpack.c.b16 %v2039, %v2038
      %v2052 = vpack.c.b16 %v2041, %v2040
      %v2053 = vpack.c.b16 %v2043, %v2042
      %v2054 = vpack.c.b16 %v2045, %v2044
      %v2055 = vpack.c.b16 %v2047, %v2046
      %2064 = vmatprep.subr.bf16.mxu0 0
      %2065 = vmatpush1.bf16.msra.mxu0 %v2048
      %2066 = vmatprep.subr.bf16.mxu0 0
      %2067 = vmatpush1.bf16.msra.mxu0 %v2049
      %2068 = vmatprep.subr.bf16.mxu0 0
      %2069 = vmatpush1.bf16.msra.mxu0 %v2050
      %2070 = vmatprep.subr.bf16.mxu0 0
      %2071 = vmatpush1.bf16.msra.mxu0 %v2051
      %2072 = vmatprep.subr.bf16.mxu0 0
      %2073 = vmatpush1.bf16.msra.mxu0 %v2052
      %2074 = vmatprep.subr.bf16.mxu0 0
      %2075 = vmatpush1.bf16.msra.mxu0 %v2053
      %2076 = vmatprep.subr.bf16.mxu0 0
      %2077 = vmatpush1.bf16.msra.mxu0 %v2054
      %2078 = vmatprep.subr.bf16.mxu0 0
      %2079 = vmatpush1.bf16.msra.mxu0 %v2055
      %2080 = vmatprep.subr.bf16.mxu0 0
      %2081 = vmatpush1.bf16.msra.mxu0 0
      %2082 = vmatprep.subr.bf16.mxu0 0
      %2083 = vmatpush1.bf16.msra.mxu0 0
      %2084 = vmatprep.subr.bf16.mxu0 0
      %2085 = vmatpush1.bf16.msra.mxu0 0
      %2086 = vmatprep.subr.bf16.mxu0 0
      %2087 = vmatpush1.bf16.msra.mxu0 0
      %2088 = vmatprep.subr.bf16.mxu0 0
      %2089 = vmatpush1.bf16.msra.mxu0 0
      %2090 = vmatprep.subr.bf16.mxu0 0
      %2091 = vmatpush1.bf16.msra.mxu0 0
      %2092 = vmatprep.subr.bf16.mxu0 0
      %2093 = vmatpush1.bf16.msra.mxu0 0
      %2094 = vmatprep.subr.bf16.mxu0 0
      %2095 = vmatpush1.bf16.msra.mxu0 0
      %2096 = vmatprep.mubr.bf16.mxu0 0
      %2097 = vmatmul.mubr.bf16.gmra.mrb[0].mxu0 %v1985
      %v2098 = vpop.f32.mrb[0].mxu0
      %v2099 = vadd.f32 %v2014, %v2098
      %v2100 = vpop.f32.mrb[0].mxu0
      %v2101 = vpop.f32.mrb[0].mxu0
      %v2102 = vadd.f32 %v2014, %v2101
      %v2103 = vpop.f32.mrb[0].mxu0
      %2104 = vmatprep.mubr.bf16.mxu0 0
      %2105 = vmatmul.mubr.bf16.gmra.mrb[0].mxu0 %v1986
      %v2106 = vpop.f32.mrb[0].mxu0
      %v2107 = vadd.f32 %v2014, %v2106
      %v2108 = vpop.f32.mrb[0].mxu0
      %v2109 = vpop.f32.mrb[0].mxu0
      %v2110 = vadd.f32 %v2014, %v2109
      %v2111 = vpop.f32.mrb[0].mxu0
      %2112 = vmatprep.mubr.bf16.mxu0 0
      %2113 = vmatmul.mubr.bf16.gmra.mrb[0].mxu0 %v1987
      %v2114 = vpop.f32.mrb[0].mxu0
      %v2115 = vadd.f32 %v2014, %v2114
      %v2116 = vpop.f32.mrb[0].mxu0
      %v2117 = vpop.f32.mrb[0].mxu0
      %v2118 = vadd.f32 %v2014, %v2117
      %v2119 = vpop.f32.mrb[0].mxu0
      %2120 = vmatprep.mubr.bf16.mxu0 0
      %2121 = vmatmul.mubr.bf16.gmra.mrb[0].mxu0 %v1988
      %v2122 = vpop.f32.mrb[0].mxu0
      %v2123 = vadd.f32 %v2014, %v2122
      %v2124 = vpop.f32.mrb[0].mxu0
      %v2125 = vpop.f32.mrb[0].mxu0
      %v2126 = vadd.f32 %v2014, %v2125
      %v2127 = vpop.f32.mrb[0].mxu0
      %2128 = vmatprep.mubr.bf16.mxu0 0
      %2129 = vmatmul.mubr.bf16.gmra.mrb[0].mxu0 %v1989
      %v2130 = vpop.f32.mrb[0].mxu0
      %v2131 = vadd.f32 %v2014, %v2130
      %v2132 = vpop.f32.mrb[0].mxu0
      %v2133 = vpop.f32.mrb[0].mxu0
      %v2134 = vadd.f32 %v2014, %v2133
      %v2135 = vpop.f32.mrb[0].mxu0
      %2136 = vmatprep.mubr.bf16.mxu0 0
      %2137 = vmatmul.mubr.bf16.gmra.mrb[0].mxu0 %v1990
      %v2138 = vpop.f32.mrb[0].mxu0
      %v2139 = vadd.f32 %v2014, %v2138
      %v2140 = vpop.f32.mrb[0].mxu0
      %v2141 = vpop.f32.mrb[0].mxu0
      %v2142 = vadd.f32 %v2014, %v2141
      %v2143 = vpop.f32.mrb[0].mxu0
      %2144 = vmatprep.mubr.bf16.mxu0 0
      %2145 = vmatmul.mubr.bf16.gmra.mrb[0].mxu0 %v1991
      %v2146 = vpop.f32.mrb[0].mxu0
      %v2147 = vadd.f32 %v2014, %v2146
      %v2148 = vpop.f32.mrb[0].mxu0
      %v2149 = vpop.f32.mrb[0].mxu0
      %v2150 = vadd.f32 %v2014, %v2149
      %v2151 = vpop.f32.mrb[0].mxu0
      %2152 = vmatprep.mubr.bf16.mxu0 0
      %2153 = vmatmul.mubr.bf16.gmra.mrb[0].mxu0 %v1992
      %v2154 = vpop.f32.mrb[0].mxu0
      %v2155 = vadd.f32 %v2014, %v2154
      %v2156 = vpop.f32.mrb[0].mxu0
      %v2157 = vpop.f32.mrb[0].mxu0
      %v2158 = vadd.f32 %v2014, %v2157
      %v2159 = vpop.f32.mrb[0].mxu0
      %2160 = vdwg.mxu0
      %vm2161 = vcmp.gt.f32.partialorder %v2099, 0.0
      %vm2162 = vcmp.gt.f32.partialorder %v2102, 0.0
      %vm2163 = vcmp.gt.f32.partialorder %v2107, 0.0
      %vm2164 = vcmp.gt.f32.partialorder %v2110, 0.0
      %vm2165 = vcmp.gt.f32.partialorder %v2115, 0.0
      %vm2166 = vcmp.gt.f32.partialorder %v2118, 0.0
      %vm2167 = vcmp.gt.f32.partialorder %v2123, 0.0
      %vm2168 = vcmp.gt.f32.partialorder %v2126, 0.0
      %vm2169 = vcmp.gt.f32.partialorder %v2131, 0.0
      %vm2170 = vcmp.gt.f32.partialorder %v2134, 0.0
      %vm2171 = vcmp.gt.f32.partialorder %v2139, 0.0
      %vm2172 = vcmp.gt.f32.partialorder %v2142, 0.0
      %vm2173 = vcmp.gt.f32.partialorder %v2147, 0.0
      %vm2174 = vcmp.gt.f32.partialorder %v2150, 0.0
      %vm2175 = vcmp.gt.f32.partialorder %v2155, 0.0
      %vm2176 = vcmp.gt.f32.partialorder %v2158, 0.0
      %v2177 = vmul.f32 %v2099, 0.3
      %v2178 = vmul.f32 %v2102, 0.3
      %v2179 = vmul.f32 %v2107, 0.3
      %v2180 = vmul.f32 %v2110, 0.3
      %v2181 = vmul.f32 %v2115, 0.3
      %v2182 = vmul.f32 %v2118, 0.3
      %v2183 = vmul.f32 %v2123, 0.3
      %v2184 = vmul.f32 %v2126, 0.3
      %v2185 = vmul.f32 %v2131, 0.3
      %v2186 = vmul.f32 %v2134, 0.3
      %v2187 = vmul.f32 %v2139, 0.3
      %v2188 = vmul.f32 %v2142, 0.3
      %v2189 = vmul.f32 %v2147, 0.3
      %v2190 = vmul.f32 %v2150, 0.3
      %v2191 = vmul.f32 %v2155, 0.3
      %v2192 = vmul.f32 %v2158, 0.3
      %v2193 = vsel %vm2161, %v2099, %v2177
      %v2194 = vsel %vm2162, %v2102, %v2178
      %v2195 = vsel %vm2163, %v2107, %v2179
      %v2196 = vsel %vm2164, %v2110, %v2180
      %v2197 = vsel %vm2165, %v2115, %v2181
      %v2198 = vsel %vm2166, %v2118, %v2182
      %v2199 = vsel %vm2167, %v2123, %v2183
      %v2200 = vsel %vm2168, %v2126, %v2184
      %v2201 = vsel %vm2169, %v2131, %v2185
      %v2202 = vsel %vm2170, %v2134, %v2186
      %v2203 = vsel %vm2171, %v2139, %v2187
      %v2204 = vsel %vm2172, %v2142, %v2188
      %v2205 = vsel %vm2173, %v2147, %v2189
      %v2206 = vsel %vm2174, %v2150, %v2190
      %v2207 = vsel %vm2175, %v2155, %v2191
      %v2208 = vsel %vm2176, %v2158, %v2192
      %v2209 = vld [vmem:[%s8] sm:$0x1]
      %v2211 = vlaneseq
      %v2212 = vshrl.u32 %v2211, 7
      %v2213 = vsub.s32 0, %v2212
      %v2214 = vrot.slane %v2209, %v2213
      %v2216 = vmul.f32 %v2193, %v2214
      %v2217 = vmul.f32 %v2194, %v2214
      %v2218 = vmul.f32 %v2195, %v2214
      %v2219 = vmul.f32 %v2196, %v2214
      %v2220 = vmul.f32 %v2197, %v2214
      %v2221 = vmul.f32 %v2198, %v2214
      %v2222 = vmul.f32 %v2199, %v2214
      %v2223 = vmul.f32 %v2200, %v2214
      %v2224 = vmul.f32 %v2201, %v2214
      %v2225 = vmul.f32 %v2202, %v2214
      %v2226 = vmul.f32 %v2203, %v2214
      %v2227 = vmul.f32 %v2204, %v2214
      %v2228 = vmul.f32 %v2205, %v2214
      %v2229 = vmul.f32 %v2206, %v2214
      %v2230 = vmul.f32 %v2207, %v2214
      %v2231 = vmul.f32 %v2208, %v2214
      %2232 = vadd.xlane.f32.xlu0 %v2216
      %v2233 = vpop.xlane.xlu0 %2232
      %2234 = vadd.xlane.f32.xlu0 %v2217
      %v2235 = vpop.xlane.xlu0 %2234
      %2236 = vadd.xlane.f32.xlu0 %v2218
      %v2237 = vpop.xlane.xlu0 %2236
      %2238 = vadd.xlane.f32.xlu0 %v2219
      %v2239 = vpop.xlane.xlu0 %2238
      %2240 = vadd.xlane.f32.xlu0 %v2220
      %v2241 = vpop.xlane.xlu0 %2240
      %2242 = vadd.xlane.f32.xlu0 %v2221
      %v2243 = vpop.xlane.xlu0 %2242
      %2244 = vadd.xlane.f32.xlu0 %v2222
      %v2245 = vpop.xlane.xlu0 %2244
      %2246 = vadd.xlane.f32.xlu0 %v2223
      %v2247 = vpop.xlane.xlu0 %2246
      %2248 = vadd.xlane.f32.xlu0 %v2224
      %v2249 = vpop.xlane.xlu0 %2248
      %2250 = vadd.xlane.f32.xlu0 %v2225
      %v2251 = vpop.xlane.xlu0 %2250
      %2252 = vadd.xlane.f32.xlu0 %v2226
      %v2253 = vpop.xlane.xlu0 %2252
      %2254 = vadd.xlane.f32.xlu0 %v2227
      %v2255 = vpop.xlane.xlu0 %2254
      %2256 = vadd.xlane.f32.xlu0 %v2228
      %v2257 = vpop.xlane.xlu0 %2256
      %2258 = vadd.xlane.f32.xlu0 %v2229
      %v2259 = vpop.xlane.xlu0 %2258
      %2260 = vadd.xlane.f32.xlu0 %v2230
      %v2261 = vpop.xlane.xlu0 %2260
      %2262 = vadd.xlane.f32.xlu0 %v2231
      %v2263 = vpop.xlane.xlu0 %2262
      %v2264 = vld [vmem:[#allocation2] sm:$0x1]
      %v2266 = vlaneseq
      %v2267 = vshrl.u32 %v2266, 7
      %v2268 = vsub.s32 0, %v2267
      %v2269 = vrot.slane %v2264, %v2268
      %v2271 = vadd.f32 %v2233, %v2269
      %v2272 = vadd.f32 %v2235, %v2269
      %v2273 = vadd.f32 %v2237, %v2269
      %v2274 = vadd.f32 %v2239, %v2269
      %v2275 = vadd.f32 %v2241, %v2269
      %v2276 = vadd.f32 %v2243, %v2269
      %v2277 = vadd.f32 %v2245, %v2269
      %v2278 = vadd.f32 %v2247, %v2269
      %v2279 = vadd.f32 %v2249, %v2269
      %v2280 = vadd.f32 %v2251, %v2269
      %v2281 = vadd.f32 %v2253, %v2269
      %v2282 = vadd.f32 %v2255, %v2269
      %v2283 = vadd.f32 %v2257, %v2269
      %v2284 = vadd.f32 %v2259, %v2269
      %v2285 = vadd.f32 %v2261, %v2269
      %v2286 = vadd.f32 %v2263, %v2269
      %2287 = vxpose.xlu0.b32.start [1/16] %v2271, 128
      %2288 = vxpose.xlu0.b32.cont [2/16] %v2272, 128
      %2289 = vxpose.xlu0.b32.cont [3/16] %v2273, 128
      %2290 = vxpose.xlu0.b32.cont [4/16] %v2274, 128
      %2291 = vxpose.xlu0.b32.cont [5/16] %v2275, 128
      %2292 = vxpose.xlu0.b32.cont [6/16] %v2276, 128
      %2293 = vxpose.xlu0.b32.cont [7/16] %v2277, 128
      %2294 = vxpose.xlu0.b32.cont [8/16] %v2278, 128
      %2295 = vxpose.xlu0.b32.cont [9/16] %v2279, 128
      %2296 = vxpose.xlu0.b32.cont [10/16] %v2280, 128
      %2297 = vxpose.xlu0.b32.cont [11/16] %v2281, 128
      %2298 = vxpose.xlu0.b32.cont [12/16] %v2282, 128
      %2299 = vxpose.xlu0.b32.cont [13/16] %v2283, 128
      %2300 = vxpose.xlu0.b32.cont [14/16] %v2284, 128
      %2301 = vxpose.xlu0.b32.cont [15/16] %v2285, 128
      %2302 = vxpose.xlu0.b32.end [16/16] %v2286, 128
      %v2303 = vpop.trf.xlu0
      %v2304 = vpop.trf.xlu0
      %v2305 = vpop.trf.xlu0
      %v2306 = vpop.trf.xlu0
      %v2307 = vpop.trf.xlu0
      %v2308 = vpop.trf.xlu0
      %v2309 = vpop.trf.xlu0
      %v2310 = vpop.trf.xlu0
      %v2311 = vpop.trf.xlu0
      %v2312 = vpop.trf.xlu0
      %v2313 = vpop.trf.xlu0
      %v2314 = vpop.trf.xlu0
      %v2315 = vpop.trf.xlu0
      %v2316 = vpop.trf.xlu0
      %v2317 = vpop.trf.xlu0
      %v2318 = vpop.trf.xlu0
      %2319 = vst [vmem:[%s429] sm:$0x1] %v2303
      %p2320 = scmp.lt.s32.totalorder %s23, 1
      %s2321 = scalar_select %p2320, %s23, 1
      %s2322 = scalar_lea.vmem %s10, %s2321
      // Predicated region
      $region61: #{critic_forward.1} parent=59 // pred_check
        %p2323 = pneg %p261
      $region62: #{critic_forward.1} parent=59 // pred_check_branch
        %2325 = sbr.rel (%p2323) target = $region64
      $region63: #{critic_forward.1} parent=59 // pred_region
        _
      $region64: #{critic_forward.1} parent=59 // pred_fallthru
        _
    $region60: #{critic_forward.1} parent=5 // pred_fallthru
      _
    %p2326 = scmp.le.s32.totalorder 2, %s18
    // Predicated region
    $region65: #{critic_forward.1} parent=5 // pred_check
      %p2327 = pneg %p2326
    $region66: #{critic_forward.1} parent=5 // pred_check_branch
      %2329 = sbr.rel (%p2327) target = $region68
    $region67: #{critic_forward.1} parent=5 // pred_region
      %s2330 = ssub.s32 %s18, 2
      // Predicated region
      $region69: #{critic_forward.1} parent=67 // pred_check
        %p2331 = pneg %p267
      $region70: #{critic_forward.1} parent=67 // pred_check_branch
        %2333 = sbr.rel (%p2331) target = $region72
      $region71: #{critic_forward.1} parent=67 // pred_region
        %p2334 = scmp.lt.s32.totalorder %s24, 1
        %s2335 = scalar_select %p2334, %s24, 1
        %s2336 = scalar_lea.vmem %s10, %s2335
      $region72: #{critic_forward.1} parent=67 // pred_fallthru
        _
    $region68: #{critic_forward.1} parent=5 // pred_fallthru
      _
  $region6: #{critic_forward.1} parent=0 // loop_footer
    %s22 = sadd.s32 1, %s18
  $region7: #{critic_forward.1} parent=0 // loop_footer_branch
    %17 = sbr.rel target = $region3
  $region8: #{critic_forward.1} parent=0 // loop_exit
    _

</llo_original>
